<compile_context>
chip_gen: v5e
topology: v5e:2x2
jax: 0.10.0
libtpu: 0.0.40
codegen_flags: <defaults>
</compile_context>

<pallas_src>
import functools
import math

import jax
import jax.numpy as jnp
import numpy as np
from jax.experimental import pallas as pl
from jax.experimental.pallas import tpu as pltpu


def _round_up(x, m):
    return ((x + m - 1) // m) * m


def _patch_transformer_kernel(fy_ref, fx_ref, row0_ref, col0_ref,
                              canvas_ref, img_hbm_ref, out_ref, dma_sem,
                              *, bh, bw):
    """One grid step = one patch composited into a window of the output."""
    n = pl.program_id(0)

    # SMEM scalar reads first (before any DMA wait).
    fy = fy_ref[n]                            # fractional row shift in [0, 1)
    fx = fx_ref[n]                            # fractional col shift in [0, 1)
    r0 = pl.multiple_of(row0_ref[n], 8)       # window origin (sublane-aligned)
    c0 = pl.multiple_of(col0_ref[n], 128)     # window origin (lane-aligned)

    # First grid step: start the clean-image HBM -> resident-output-block DMA.
    # It is waited on just before the only read of out_ref below, so it fully
    # overlaps patch 0's bilinear/mask compute.
    @pl.when(n == 0)
    def _():
        pltpu.make_async_copy(img_hbm_ref, out_ref, dma_sem.at[0]).start()

    # Separable bilinear translation of the fused [patch ; mask] canvas.
    # Canvas rows/cols are image rows/cols offset by (row0, col0); output
    # window pixel (a, b) reads canvas taps (a, b), (a, b+1), (a+1, b),
    # (a+1, b+1).  Row pass first (on the lane-padded width), then column
    # pass on the window width.
    a = canvas_ref[:, 0:bh, :]                     # (6, bh, CW)
    b = canvas_ref[:, 1:bh + 1, :]                 # (6, bh, CW), +1 sublane
    row_lerp = a + fy * (b - a)

    u = row_lerp[:, :, 0:bw]
    v = row_lerp[:, :, 1:bw + 1]                   # +1 lane
    t = u + fx * (v - u)                           # (6, bh, bw)

    p_t = t[0:3]                                   # translated patch
    m_t = t[3:6]                                   # translated mask
    m_t = jnp.where(m_t >= 0.999, m_t, 0.0)
    adv = p_t * m_t

    @pl.when(n == 0)
    def _():
        pltpu.make_async_copy(img_hbm_ref, out_ref, dma_sem.at[0]).wait()

    # Ordered composite into the aligned window only (exact == 0 semantics,
    # as in the Torch reference).
    win = out_ref[:, pl.ds(r0, bh), pl.ds(c0, bw)]
    out_ref[:, pl.ds(r0, bh), pl.ds(c0, bw)] = jnp.where(adv == 0.0, win, adv)


def patch_transformer_forward(adv_patch_list, patch_location_list, img_size,
                              img_clean):
    """JAX/Pallas equivalent of PatchTransformer.forward.

    adv_patch_list:      list of (3, ph, pw) float arrays (ph, pw <= img_size)
    patch_location_list: list of (x_frac, y_frac) python floats (>= 0)
    img_clean:           (1, 3, img_size, img_size) float
    returns:             (1, 3, img_size, img_size) float32
    """
    assert len(adv_patch_list) == len(patch_location_list)
    assert len(adv_patch_list) >= 1
    N = len(adv_patch_list)
    S = int(img_size)

    # Padded image extent (lane/sublane-dense output block).
    HO = _round_up(S, 8)
    WO = _round_up(S, 128)

    max_ph = max(int(p.shape[1]) for p in adv_patch_list)
    max_pw = max(int(p.shape[2]) for p in adv_patch_list)

    # Static composite-window size shared by all patches; it must cover the
    # patch's (+1 pixel bilinear spread) footprint for any residual offset of
    # the 8/128-aligned window origin.
    BH = min(HO, _round_up(max_ph, 8) + 8)
    BW = min(WO, _round_up(max_pw, 128) + 128)
    # Canvas additionally holds the +1-row / +1-col taps of the window.
    CH = BH + 8
    CW = BW + 128

    fy_l, fx_l, r0_l, c0_l, canv_l = [], [], [], [], []
    for p, (lx, ly) in zip(adv_patch_list, patch_location_list):
        p_np = np.asarray(p, dtype=np.float32)
        _, ph, pw = p_np.shape
        assert ph <= S and pw <= S
        assert float(lx) >= 0.0 and int(float(lx) * S) <= S
        assert float(ly) >= 0.0 and int(float(ly) * S) <= S

        # grid_sample(align_corners=False): output pixel j samples the input
        # at pixel j - l*S/2.  Split into integer placement + fraction.
        sx = float(lx) * S / 2.0
        sy = float(ly) * S / 2.0
        oy = math.floor(-sy)
        ox = math.floor(-sx)
        fy = -sy - oy                     # fractional parts in [0, 1)
        fx = -sx - ox
        ry0 = -oy                         # integer placement offsets (>= 0)
        rx0 = -ox

        # Tile-aligned window origin, clamped into the padded image.  Any
        # patch content the canvas clipping drops maps to off-image pixels.
        row0 = min(max(((ry0 - 1) // 8) * 8, 0), HO - BH)
        col0 = min(max(((rx0 - 1) // 128) * 128, 0), WO - BW)
        py = ry0 - row0                   # residual placement inside canvas
        px = rx0 - col0

        patch_c = np.zeros((3, CH, CW), np.float32)
        mask_c = np.zeros((3, CH, CW), np.float32)
        # Reference mask: 1 everywhere inside the translated S x S square
        # (zero-padded patch square), overridden with (patch >= 0) inside the
        # real patch extent; 0 outside the square (grid_sample zero padding).
        mask_c[:, py:min(CH, py + S), px:min(CW, px + S)] = 1.0
        vh = max(0, min(ph, CH - py))
        vw = max(0, min(pw, CW - px))
        if vh > 0 and vw > 0:
            patch_c[:, py:py + vh, px:px + vw] = p_np[:, :vh, :vw]
            mask_c[:, py:py + vh, px:px + vw] = (
                p_np[:, :vh, :vw] >= 0.0).astype(np.float32)

        canv_l.append(np.concatenate([patch_c, mask_c], axis=0))  # (6,CH,CW)
        fy_l.append(fy)
        fx_l.append(fx)
        r0_l.append(row0)
        c0_l.append(col0)

    canvases = jnp.asarray(np.stack(canv_l, axis=0))          # (N, 6, CH, CW)
    fy_a = jnp.asarray(fy_l, jnp.float32)
    fx_a = jnp.asarray(fx_l, jnp.float32)
    r0_a = jnp.asarray(r0_l, jnp.int32)
    c0_a = jnp.asarray(c0_l, jnp.int32)

    img_pad = np.zeros((3, HO, WO), np.float32)
    img_pad[:, :S, :S] = np.asarray(img_clean, np.float32).reshape(3, S, S)
    img_pad = jnp.asarray(img_pad)

    # VMEM budget: resident output block + double-buffered canvases +
    # intermediates, capped well under physical VMEM for compiler headroom.
    out_bytes = 3 * HO * WO * 4
    canvas_bytes = 6 * CH * CW * 4
    interm_bytes = (6 * BH * CW + 2 * 6 * BH * BW + 3 * 3 * BH * BW) * 4
    need = out_bytes + 2 * canvas_bytes + interm_bytes + (4 << 20)
    try:
        phys_vmem = int(pltpu.get_tpu_info().vmem_capacity_bytes)
    except Exception:
        phys_vmem = 64 << 20              # conservative (v7x) fallback
    vmem_limit = int(min((phys_vmem * 3) // 4, max(need, 16 << 20)))
    # TODO(synk): for img_size large enough that the resident f32 output block
    # alone approaches the cap, band the output along rows with an extra
    # leading "parallel" grid axis (also engages both v7x TensorCores).

    kernel = functools.partial(_patch_transformer_kernel, bh=BH, bw=BW)

    grid_spec = pltpu.PrefetchScalarGridSpec(
        num_scalar_prefetch=4,
        grid=(N,),
        in_specs=[
            # One fused [patch ; mask] canvas per grid step.  Default
            # double-buffering; bump to pl.Buffered(3) only if the now-small
            # canvas DMA shows up as exposed latency.
            pl.BlockSpec((pl.Squeezed(), 6, CH, CW),
                         lambda n, *_: (n, 0, 0, 0)),
            # Clean image stays in HBM; DMA'd once into the resident output.
            pl.BlockSpec(memory_space=pl.ANY),
        ],
        out_specs=pl.BlockSpec((3, HO, WO), lambda n, *_: (0, 0, 0)),
        scratch_shapes=[pltpu.SemaphoreType.DMA((1,))],
    )

    out = pl.pallas_call(
        kernel,
        out_shape=jax.ShapeDtypeStruct((3, HO, WO), jnp.float32),
        grid_spec=grid_spec,
        compiler_params=pltpu.CompilerParams(
            dimension_semantics=("arbitrary",),   # ordered composite
            vmem_limit_bytes=vmem_limit),
    )(fy_a, fx_a, r0_a, c0_a, canvases, img_pad)

    return out[:, :S, :S].reshape(1, 3, S, S)


def _reference_forward(adv_patch_list, patch_location_list, img_size, img_clean):
    """Pure-JAX reference (mirrors the Torch math) for correctness check."""
    S = int(img_size)
    out = img_clean.reshape(3, S, S).astype(jnp.float32)
    for p, (lx, ly) in zip(adv_patch_list, patch_location_list):
        _, ph, pw = p.shape
        pp = jnp.zeros((3, S, S), jnp.float32).at[:, :ph, :pw].set(
            p.astype(jnp.float32))
        m = jnp.where(pp >= 0.0, 1.0, 0.0)
        sx = float(lx) * S / 2.0
        sy = float(ly) * S / 2.0
        ox = math.floor(-sx)
        oy = math.floor(-sy)
        fx = -sx - ox
        fy = -sy - oy

        def shift(a):
            ap = jnp.pad(a, ((0, 0), (S, S), (S, S)))

            def tap(dy, dx):
                return ap[:, S + oy + dy:S + oy + dy + S,
                          S + ox + dx:S + ox + dx + S]

            return ((1 - fy) * (1 - fx) * tap(0, 0)
                    + (1 - fy) * fx * tap(0, 1)
                    + fy * (1 - fx) * tap(1, 0)
                    + fy * fx * tap(1, 1))

        p_t = shift(pp)
        m_t = shift(m)
        m_t = jnp.where(m_t >= 0.999, m_t, 0.0)
        adv = p_t * m_t
        out = jnp.where(adv == 0.0, out, adv)
    return out.reshape(1, 3, S, S)


# TODO(synk): connected_domin_detect (skimage connected-component validation
# on host) is a data-quality assertion, not tensor compute; it is not ported.

if __name__ == "__main__":
    key = jax.random.PRNGKey(0)
    k1, k2, k3, k4 = jax.random.split(key, 4)

    IMG_SIZE = 300

    # Patches: positive foreground values, background pixels = -1 in all
    # channels (the module's convention).
    patch0 = jax.random.uniform(k1, (3, 24, 16), jnp.float32,
                                minval=0.05, maxval=1.0)
    patch0 = patch0.at[:, :6, :6].set(-1.0)           # background corner
    patch1 = jax.random.uniform(k2, (3, 16, 32), jnp.float32,
                                minval=0.05, maxval=1.0)
    patch1 = patch1.at[:, 12:, 24:].set(-1.0)         # background corner
    patch2 = jax.random.uniform(k3, (3, 40, 48), jnp.float32,
                                minval=0.05, maxval=1.0)
    patch2 = patch2.at[:, 10:20, 10:30].set(-1.0)     # background hole

    adv_patch_list = [patch0, patch1, patch2]
    # patch1 overlaps patch0 (exercises the ordered composite); patch2 sits in
    # the lower-right (exercises non-zero aligned window origins).
    patch_location_list = [(0.263, 0.131), (0.301, 0.149), (0.902, 0.815)]

    img_clean = jax.random.uniform(k4, (1, 3, IMG_SIZE, IMG_SIZE), jnp.float32)

    out = patch_transformer_forward(adv_patch_list, patch_location_list,
                                    IMG_SIZE, img_clean)
    out = jax.block_until_ready(out)

    ref = _reference_forward(adv_patch_list, patch_location_list,
                             IMG_SIZE, img_clean)
    ref = jax.block_until_ready(ref)

    assert out.shape == (1, 3, IMG_SIZE, IMG_SIZE)
    np.testing.assert_allclose(np.asarray(out), np.asarray(ref),
                               rtol=1e-5, atol=1e-5)
    print("KERNEL_OK")
</pallas_src>

<mosaic_0001>
module attributes {stable_mosaic.version = 11 : i64} {
  func.func @_patch_transformer_kernel(%arg0: i32, %arg1: memref<3xf32, #tpu.memory_space<smem>>, %arg2: memref<3xf32, #tpu.memory_space<smem>>, %arg3: memref<3xi32, #tpu.memory_space<smem>>, %arg4: memref<3xi32, #tpu.memory_space<smem>>, %arg5: memref<1x6x56x384xf32, #tpu.memory_space<vmem>>, %arg6: memref<3x304x384xf32, #tpu.memory_space<any>>, %arg7: memref<3x304x384xf32, #tpu.memory_space<vmem>>, %arg8: memref<1x!tpu.dma_semaphore, #tpu.memory_space<semaphore_mem>>) attributes {dimension_semantics = [#tpu.dimension_semantics<arbitrary>], iteration_bounds = array<i64: 3>, scalar_prefetch = 4 : i64, scratch_operands = 1 : i64, tpu.core_type = #tpu.core_type<tc>, window_params = [{transform_indices = @transform_0, window_bounds = array<i64: 1, 6, 56, 384>}, {}, {pipeline_mode = #tpu.pipeline_mode<synchronous>, transform_indices = @transform_2, window_bounds = array<i64: 3, 304, 384>}]} {
    %0 = arith.index_cast %arg0 : i32 to index
    %1 = memref.load %arg1[%0] : memref<3xf32, #tpu.memory_space<smem>>
    %2 = arith.index_cast %arg0 : i32 to index
    %3 = memref.load %arg2[%2] : memref<3xf32, #tpu.memory_space<smem>>
    %4 = arith.index_cast %arg0 : i32 to index
    %5 = memref.load %arg3[%4] : memref<3xi32, #tpu.memory_space<smem>>
    %6 = tpu.assume_multiple %5, 8 : i32
    %7 = arith.index_cast %arg0 : i32 to index
    %8 = memref.load %arg4[%7] : memref<3xi32, #tpu.memory_space<smem>>
    %9 = tpu.assume_multiple %8, 128 : i32
    %c0_i32 = arith.constant 0 : i32
    %10 = arith.cmpi eq, %arg0, %c0_i32 : i32
    %11 = arith.extui %10 : i1 to i32
    %c0_i32_0 = arith.constant 0 : i32
    %12 = arith.cmpi ne, %11, %c0_i32_0 : i32
    scf.if %12 {
      %c0_i32_13 = arith.constant 0 : i32
      %46 = tpu.memref_slice %arg8[%c0_i32_13] : memref<1x!tpu.dma_semaphore, #tpu.memory_space<semaphore_mem>> -> memref<1x!tpu.dma_semaphore, #tpu.memory_space<semaphore_mem>>
      %47 = tpu.memref_squeeze %46 : memref<1x!tpu.dma_semaphore, #tpu.memory_space<semaphore_mem>> -> memref<!tpu.dma_semaphore, #tpu.memory_space<semaphore_mem>>
      tpu.enqueue_dma source(%arg6 : memref<3x304x384xf32, #tpu.memory_space<any>>) target(%arg7 : memref<3x304x384xf32, #tpu.memory_space<vmem>>) target_semaphore(%47 : memref<!tpu.dma_semaphore, #tpu.memory_space<semaphore_mem>>)
    } else {
    }
    %c0 = arith.constant 0 : index
    %c0_1 = arith.constant 0 : index
    %c0_2 = arith.constant 0 : index
    %c0_3 = arith.constant 0 : index
    %13 = vector.load %arg5[%c0, %c0_1, %c0_2, %c0_3] : memref<1x6x56x384xf32, #tpu.memory_space<vmem>>, vector<1x6x48x384xf32>
    %14 = vector.shape_cast %13 : vector<1x6x48x384xf32> to vector<6x48x384xf32>
    %c0_4 = arith.constant 0 : index
    %c0_5 = arith.constant 0 : index
    %c1 = arith.constant 1 : index
    %c0_6 = arith.constant 0 : index
    %15 = vector.load %arg5[%c0_4, %c0_5, %c1, %c0_6] : memref<1x6x56x384xf32, #tpu.memory_space<vmem>>, vector<1x6x48x384xf32>
    %16 = vector.shape_cast %15 : vector<1x6x48x384xf32> to vector<6x48x384xf32>
    %17 = arith.subf %16, %14 : vector<6x48x384xf32>
    %18 = vector.broadcast %1 : f32 to vector<6x48x384xf32>
    %19 = arith.mulf %18, %17 : vector<6x48x384xf32>
    %20 = arith.addf %14, %19 : vector<6x48x384xf32>
    %21 = vector.extract_strided_slice %20 {offsets = [0, 0, 0], sizes = [6, 48, 256], strides = [1, 1, 1]} : vector<6x48x384xf32> to vector<6x48x256xf32>
    %22 = vector.extract_strided_slice %20 {offsets = [0, 0, 1], sizes = [6, 48, 256], strides = [1, 1, 1]} : vector<6x48x384xf32> to vector<6x48x256xf32>
    %23 = arith.subf %22, %21 : vector<6x48x256xf32>
    %24 = vector.broadcast %3 : f32 to vector<6x48x256xf32>
    %25 = arith.mulf %24, %23 : vector<6x48x256xf32>
    %26 = arith.addf %21, %25 : vector<6x48x256xf32>
    %27 = vector.extract_strided_slice %26 {offsets = [0, 0, 0], sizes = [3, 48, 256], strides = [1, 1, 1]} : vector<6x48x256xf32> to vector<3x48x256xf32>
    %28 = vector.extract_strided_slice %26 {offsets = [3, 0, 0], sizes = [3, 48, 256], strides = [1, 1, 1]} : vector<6x48x256xf32> to vector<3x48x256xf32>
    %cst = arith.constant 9.990000e-01 : f32
    %29 = vector.broadcast %cst : f32 to vector<3x48x256xf32>
    %30 = arith.cmpf oge, %28, %29 : vector<3x48x256xf32>
    %cst_7 = arith.constant 0.000000e+00 : f32
    %31 = vector.broadcast %cst_7 : f32 to vector<3x48x256xf32>
    %32 = arith.select %30, %28, %31 : vector<3x48x256xi1>, vector<3x48x256xf32>
    %33 = arith.mulf %27, %32 : vector<3x48x256xf32>
    %c0_i32_8 = arith.constant 0 : i32
    %34 = arith.cmpi eq, %arg0, %c0_i32_8 : i32
    %35 = arith.extui %34 : i1 to i32
    %c0_i32_9 = arith.constant 0 : i32
    %36 = arith.cmpi ne, %35, %c0_i32_9 : i32
    scf.if %36 {
      %c0_i32_13 = arith.constant 0 : i32
      %46 = tpu.memref_slice %arg8[%c0_i32_13] : memref<1x!tpu.dma_semaphore, #tpu.memory_space<semaphore_mem>> -> memref<1x!tpu.dma_semaphore, #tpu.memory_space<semaphore_mem>>
      %47 = tpu.memref_squeeze %46 : memref<1x!tpu.dma_semaphore, #tpu.memory_space<semaphore_mem>> -> memref<!tpu.dma_semaphore, #tpu.memory_space<semaphore_mem>>
      tpu.wait_dma2 semaphore(%47 : memref<!tpu.dma_semaphore, #tpu.memory_space<semaphore_mem>>) src(%arg6 : memref<3x304x384xf32, #tpu.memory_space<any>>) dst(%arg7 : memref<3x304x384xf32, #tpu.memory_space<vmem>>)
    } else {
    }
    %c0_10 = arith.constant 0 : index
    %37 = arith.index_cast %6 : i32 to index
    %38 = arith.index_cast %9 : i32 to index
    %39 = vector.load %arg7[%c0_10, %37, %38] : memref<3x304x384xf32, #tpu.memory_space<vmem>>, vector<3x48x256xf32>
    %cst_11 = arith.constant 0.000000e+00 : f32
    %40 = vector.broadcast %cst_11 : f32 to vector<3x48x256xf32>
    %41 = arith.cmpf oeq, %33, %40 : vector<3x48x256xf32>
    %42 = arith.select %41, %39, %33 : vector<3x48x256xi1>, vector<3x48x256xf32>
    %c0_12 = arith.constant 0 : index
    %43 = arith.index_cast %6 : i32 to index
    %44 = arith.index_cast %9 : i32 to index
    %45 = vector.load %arg7[%c0_12, %43, %44] : memref<3x304x384xf32, #tpu.memory_space<vmem>>, vector<3x48x256xf32>
    tpu.vector_store %arg7[%c0_12, %43, %44], %42 {strides = array<i32>} : memref<3x304x384xf32, #tpu.memory_space<vmem>>, vector<3x48x256xf32>,
    return
  }
  func.func @transform_0(%arg0: i32, %arg1: memref<3xf32, #tpu.memory_space<smem>>, %arg2: memref<3xf32, #tpu.memory_space<smem>>, %arg3: memref<3xi32, #tpu.memory_space<smem>>, %arg4: memref<3xi32, #tpu.memory_space<smem>>) -> (i32, i32, i32, i32) {
    %c0_i32 = arith.constant 0 : i32
    %c0_i32_0 = arith.constant 0 : i32
    %c0_i32_1 = arith.constant 0 : i32
    %c0_i32_2 = arith.constant 0 : i32
    return %arg0, %c0_i32, %c0_i32_0, %c0_i32_1 : i32, i32, i32, i32
  }
  func.func @transform_2(%arg0: i32, %arg1: memref<3xf32, #tpu.memory_space<smem>>, %arg2: memref<3xf32, #tpu.memory_space<smem>>, %arg3: memref<3xi32, #tpu.memory_space<smem>>, %arg4: memref<3xi32, #tpu.memory_space<smem>>) -> (i32, i32, i32) {
    %c0_i32 = arith.constant 0 : i32
    %c0_i32_0 = arith.constant 0 : i32
    %c0_i32_1 = arith.constant 0 : i32
    %c0_i32_2 = arith.constant 0 : i32
    return %c0_i32, %c0_i32_0, %c0_i32_1 : i32, i32, i32
  }
}

</mosaic_0001>

<llo_original>
// kernel: tpu_custom_call.1
$region0: #{tpu_custom_call.1}
  #allocation0 [shape = 'u32[]', space=smem, size = 0x4, offset = 0x4, fixed_abs, tag = 'smem constant byte address 0x4 - core index']
  #allocation1 [shape = 'u32[72,128]{1,0:T(1,128)}', space=vmem, size = 0x9000, scoped, tag = 'internal scratch']
  #allocation2 [shape = 's32[1]{0}', space=sflag, size = 0x4, scoped, tag = 'scratch operand']
  #allocation3 [shape = 's32[1]{0}', space=sflag, size = 0x4, scoped, tag = 'scoped memory for tpu_custom_call.1']
  #allocation4 [shape = 'u8[512]{0}', space=smem, size = 0x200, scoped, tag = 'prefetched SMEM operand 0']
  #allocation5 [shape = 'u8[512]{0}', space=smem, size = 0x200, scoped, tag = 'prefetched SMEM operand 1']
  #allocation6 [shape = 'u8[512]{0}', space=smem, size = 0x200, scoped, tag = 'prefetched SMEM operand 2']
  #allocation7 [shape = 'u8[512]{0}', space=smem, size = 0x200, scoped, tag = 'prefetched SMEM operand 3']
  #allocation12 [shape = 's32[]', space=sflag, size = 0x4, offset = 0, fixed_abs, tag = 'sflag constant byte address 0x0 - dummy sync flag']
  #allocation13 [shape = 's32[]', space=sflag, size = 0x4, offset = 0, fixed_abs, tag = 'sflag constant byte address 0x0 - dummy sync flag']
  #allocation14 [shape = 'u32[]', space=smem, size = 0x4, offset = 0x44, fixed_abs, tag = 'smem constant byte address 0x44 - assertion arg 0']
  #allocation15 [shape = 'u32[]', space=smem, size = 0x4, offset = 0x48, fixed_abs, tag = 'smem constant byte address 0x48 - assertion arg 1']
  %s0 = inlined_call_operand.hbm [shape: f32[3], index: 0, kind: input, shape index: {}]
  %s1 = inlined_call_operand.hbm [shape: f32[3], index: 1, kind: input, shape index: {}]
  %s2 = inlined_call_operand.hbm [shape: s32[3], index: 2, kind: input, shape index: {}]
  %s3 = inlined_call_operand.hbm [shape: s32[3], index: 3, kind: input, shape index: {}]
  %s4 = inlined_call_operand.hbm [shape: f32[3,6,56,384], index: 4, kind: input, shape index: {}]
  %s5 = inlined_call_operand.hbm [shape: f32[3,304,384], index: 5, kind: input, shape index: {}]
  %s6 = inlined_call_operand.hbm [shape: f32[3,304,384], index: 6, kind: output, shape index: {}]
  %s7 = sld [smem:[#allocation0]]
  $region53: #{tpu_custom_call.1} parent=0
    _
  %s9 = ssub.s32 1, %s7
  %s10 = scalar_select 0, %s9, %s7
  %s12 = sshll.u32 %s0, 4
  %s13 = int_to_ptr.hbm [resolvable:$true] %s12
  %15 = dma.hbm_to_smem %s13, 16, [#allocation4], [#allocation3]
  %s17 = sshll.u32 %s1, 4
  %s18 = int_to_ptr.hbm [resolvable:$true] %s17
  %20 = dma.hbm_to_smem %s18, 16, [#allocation5], [#allocation3]
  %s22 = sshll.u32 %s2, 4
  %s23 = int_to_ptr.hbm [resolvable:$true] %s22
  %25 = dma.hbm_to_smem %s23, 16, [#allocation6], [#allocation3]
  %s27 = sshll.u32 %s3, 4
  %s28 = int_to_ptr.hbm [resolvable:$true] %s27
  %30 = dma.hbm_to_smem %s28, 16, [#allocation7], [#allocation3]
  %32 = dma.done [#allocation3], 64
  %33 = sfence
  $region1: #{tpu_custom_call.1} parent=0
    #allocation8 [shape = 'u8[1032192]{0}', space=vmem, size = 0xfc000, scoped, tag = 'input window, operand 4']
    #allocation9 [shape = 's32[2]{0}', space=sflag, size = 0x8, scoped, tag = 'scoped memory for tpu_custom_call.1']
    #allocation10 [shape = 's32[2]{0}', space=sflag, size = 0x8, scoped, tag = 'scoped memory for tpu_custom_call.1']
    #allocation11 [shape = 'u8[1400832]{0}', space=vmem, size = 0x156000, scoped, tag = 'output window, operand 0, single buffered']
    %34 = vsyncpa [#allocation9], 0
    %s35 = scalar_lea.sflag [#allocation9], 1
    %36 = vsyncpa %s35, 0
    %37 = vsyncpa [#allocation10], 0
    loop: start=0, step=1, limit=5
    $region2: #{tpu_custom_call.1} parent=1 // loop_pre_header
      _
    $region3: #{tpu_custom_call.1} parent=1 // loop_header
      %s39 = sphi 0, %s43
      %p40 = scmp.ge.s32.totalorder %s39, 5
      %s49 = sphi 0, %s51
      %s52 = sphi 0, %s49
      %s53 = sphi 0, %s52
      %s69 = sphi 0, %s53
      %s73 = sphi 0, %s73
      %s75 = sphi 0, %s73
      %s76 = sphi 0, %s75
      %s90 = sphi 0, %s76
    $region4: #{tpu_custom_call.1} parent=1 // loop_header_branch
      %42 = sbr.rel (%p40) target = $region8
    $region5: #{tpu_custom_call.1} parent=1 // loop_body
      %s44 = ssub.s32 %s39, 1
      %s45 = ssub.s32 %s39, 2
      %s46 = sadd.s32 %s39, 1
      %s47 = ssub.s32 %s39, %s46
      %p48 = scmp.eq.s32.totalorder %s47, 0
      %s50 = sadd.s32 %s49, 1
      %s51 = scalar_select %p48, %s49, %s50
      %p54 = pneg %p48
      %p55 = scmp.eq.s32.totalorder %s39, 2
      %p56 = por %p54, %p55
      %p57 = scmp.ne.s32.totalorder %s49, %s52
      %p58 = scmp.eq.s32.totalorder %s39, 0
      %p59 = por %p57, %p58
      %p60 = scmp.ne.s32.totalorder %s49, %s52
      %p61 = scmp.eq.s32.totalorder %s44, 2
      %p62 = por %p60, %p61
      %p63 = scmp.ne.s32.totalorder %s52, %s53
      %p64 = scmp.eq.s32.totalorder %s44, 0
      %p65 = por %p63, %p64
      %p66 = scmp.ne.s32.totalorder %s52, %s53
      %p67 = scmp.eq.s32.totalorder %s45, 2
      %p68 = por %p66, %p67
      %p70 = scmp.ne.s32.totalorder %s53, %s69
      %p71 = scmp.eq.s32.totalorder %s45, 0
      %p72 = por %p70, %p71
      %s74 = sadd.s32 %s73, 1
      %p77 = scmp.eq.s32.totalorder %s39, 2
      %p78 = scmp.ne.s32.totalorder %s73, %s75
      %p79 = scmp.eq.s32.totalorder %s39, 0
      %p80 = por %p78, %p79
      %p81 = scmp.ne.s32.totalorder %s73, %s75
      %p82 = scmp.eq.s32.totalorder %s44, 2
      %p83 = por %p81, %p82
      %p84 = scmp.ne.s32.totalorder %s75, %s76
      %p85 = scmp.eq.s32.totalorder %s44, 0
      %p86 = por %p84, %p85
      %p87 = scmp.ne.s32.totalorder %s75, %s76
      %p88 = scmp.eq.s32.totalorder %s45, 2
      %p89 = por %p87, %p88
      %p91 = scmp.ne.s32.totalorder %s76, %s90
      %p92 = scmp.eq.s32.totalorder %s45, 0
      %p93 = por %p91, %p92
      %p94 = scmp.le.s32.totalorder 1, %s39
      %p95 = scmp.lt.s32.totalorder %s39, 4
      %p96 = pnand %p94, %p95
      %p97 = pneg %p96
      // Predicated region
      $region9: #{tpu_custom_call.1} parent=5 // pred_check
        _
      $region10: #{tpu_custom_call.1} parent=5 // pred_check_branch
        %99 = sbr.rel (%p96) target = $region12
      $region11: #{tpu_custom_call.1} parent=5 // pred_region
        %s100 = ssub.s32 %s39, 1
      $region12: #{tpu_custom_call.1} parent=5 // pred_fallthru
        _
      %p101 = scmp.lt.s32.totalorder %s39, 3
      // Predicated region
      $region13: #{tpu_custom_call.1} parent=5 // pred_check
        %p102 = pneg %p101
      $region14: #{tpu_custom_call.1} parent=5 // pred_check_branch
        %104 = sbr.rel (%p102) target = $region16
      $region15: #{tpu_custom_call.1} parent=5 // pred_region
        // Predicated region
        $region17: #{tpu_custom_call.1} parent=15 // pred_check
          %p105 = pneg %p59
        $region18: #{tpu_custom_call.1} parent=15 // pred_check_branch
          %107 = sbr.rel (%p105) target = $region20
        $region19: #{tpu_custom_call.1} parent=15 // pred_region
          %s108 = sand.u32 %s49, 1
          %s109 = scalar_lea.sflag [#allocation9], %s108
          %s110 = sand.u32 %s49, 1
          %s111 = smul.addr %s110, 1008
          %s112 = scalar_lea.vmem [#allocation8], %s111
          %114 = vsyncadd %s109, 0
          %s115 = smul.addr %s39, 126
          %s116 = smul.addr %s115, 8
          %s117 = scalar_lea.hbm %s4, %s116
          %s118 = sshll.u32 %s117, 4
          %s119 = int_to_ptr.hbm [resolvable:$true] %s118
          %s120 = sshll.u32 %s112, 4
          %s121 = int_to_ptr.vmem [resolvable:$true] %s120
          %126 = dma.hbm_to_vmem [thread:$0]  %s119, 16128, %s121, %s109, 384, 384, 24
        $region20: #{tpu_custom_call.1} parent=15 // pred_fallthru
          _
      $region16: #{tpu_custom_call.1} parent=5 // pred_fallthru
        _
      %p127 = scmp.le.s32.totalorder 1, %s39
      %p128 = scmp.lt.s32.totalorder %s39, 4
      %p129 = pnand %p127, %p128
      %p130 = pneg %p129
      // Predicated region
      $region21: #{tpu_custom_call.1} parent=5 // pred_check
        _
      $region22: #{tpu_custom_call.1} parent=5 // pred_check_branch
        %132 = sbr.rel (%p129) target = $region24
      $region23: #{tpu_custom_call.1} parent=5 // pred_region
        %s133 = ssub.s32 %s39, 1
        %s134 = sand.u32 %s52, 1
        %s135 = scalar_lea.sflag [#allocation9], %s134
        %s136 = sand.u32 %s52, 1
        %s137 = smul.addr %s136, 1008
        %s138 = scalar_lea.vmem [#allocation8], %s137
        // Predicated region
        $region25: #{tpu_custom_call.1} parent=23 // pred_check
          %p139 = pneg %p65
        $region26: #{tpu_custom_call.1} parent=23 // pred_check_branch
          %141 = sbr.rel (%p139) target = $region28
        $region27: #{tpu_custom_call.1} parent=23 // pred_region
          %143 = dma.done %s135, 16128
        $region28: #{tpu_custom_call.1} parent=23 // pred_fallthru
          _
        %s144 = sand.u32 %s52, 1
        %s145 = scalar_lea.sflag [#allocation9], %s144
        %s146 = sand.u32 %s52, 1
        %s147 = smul.addr %s146, 1008
        %s148 = scalar_lea.vmem [#allocation8], %s147
        %p149 = pneg %p65
        %p150 = pneg %p62
        %p151 = pneg %p86
        %p152 = pneg %p83
        %s153 = sld [smem:[#allocation4 + %s44]]
        %s154 = sld [smem:[#allocation5 + %s44]]
        %s155 = sld [smem:[#allocation6 + %s44]]
        %s156 = sld [smem:[#allocation7 + %s44]]
        %p157 = scmp.eq.s32.totalorder %s44, 0
        // Predicated region
        $region29: #{tpu_custom_call.1} parent=23 // pred_check
          %p158 = pneg %p157
        $region30: #{tpu_custom_call.1} parent=23 // pred_check_branch
          %160 = sbr.rel (%p158) target = $region32
        $region31: #{tpu_custom_call.1} parent=23 // pred_region
          // Predicated region
          $region33: #{tpu_custom_call.1} parent=31 // pred_check
            _
          $region34: #{tpu_custom_call.1} parent=31 // pred_check_branch
            %162 = sbr.rel target = $region36
          $region35: #{tpu_custom_call.1} parent=31 // pred_region
            %163 = sst [smem:[#allocation14]] [#allocation13]
            %164 = sst [smem:[#allocation15]] [#allocation12]
          $region36: #{tpu_custom_call.1} parent=31 // pred_fallthru
            _
          %166 = shalt.err (0)
          %s168 = sshll.u32 %s5, 4
          %s169 = int_to_ptr.hbm [resolvable:$true] %s168
          %s170 = sshll.u32 [#allocation11], 4
          %s171 = int_to_ptr.vmem [resolvable:$true] %s170
          %173 = dma.hbm_to_vmem [thread:$0]  %s169, 43776, %s171, [#allocation2]
        $region32: #{tpu_custom_call.1} parent=23 // pred_fallthru
          _
        %v174 = vld [vmem:[%s138] sm:$0xff]
        %v175 = vld [vmem:[%s138 + $0x8] sm:$0xff]
        %v176 = vld [vmem:[%s138 + $0x10] sm:$0xff]
        %v177 = vld [vmem:[%s138 + $0x18] sm:$0xff]
        %v178 = vld [vmem:[%s138 + $0x20] sm:$0xff]
        %v179 = vld [vmem:[%s138 + $0x28] sm:$0xff]
        %v180 = vld [vmem:[%s138 + $0x30] sm:$0xff]
        %v181 = vld [vmem:[%s138 + $0x38] sm:$0xff]
        %v182 = vld [vmem:[%s138 + $0x40] sm:$0xff]
        %v183 = vld [vmem:[%s138 + $0x48] sm:$0xff]
        %v184 = vld [vmem:[%s138 + $0x50] sm:$0xff]
        %v185 = vld [vmem:[%s138 + $0x58] sm:$0xff]
        %v186 = vld [vmem:[%s138 + $0x60] sm:$0xff]
        %v187 = vld [vmem:[%s138 + $0x68] sm:$0xff]
        %v188 = vld [vmem:[%s138 + $0x70] sm:$0xff]
        %v189 = vld [vmem:[%s138 + $0x78] sm:$0xff]
        %v190 = vld [vmem:[%s138 + $0x80] sm:$0xff]
        %v191 = vld [vmem:[%s138 + $0x88] sm:$0xff]
        %v192 = vld [vmem:[%s138 + $0xa8] sm:$0xff]
        %v193 = vld [vmem:[%s138 + $0xb0] sm:$0xff]
        %v194 = vld [vmem:[%s138 + $0xb8] sm:$0xff]
        %v195 = vld [vmem:[%s138 + $0xc0] sm:$0xff]
        %v196 = vld [vmem:[%s138 + $0xc8] sm:$0xff]
        %v197 = vld [vmem:[%s138 + $0xd0] sm:$0xff]
        %v198 = vld [vmem:[%s138 + $0xd8] sm:$0xff]
        %v199 = vld [vmem:[%s138 + $0xe0] sm:$0xff]
        %v200 = vld [vmem:[%s138 + $0xe8] sm:$0xff]
        %v201 = vld [vmem:[%s138 + $0xf0] sm:$0xff]
        %v202 = vld [vmem:[%s138 + $0xf8] sm:$0xff]
        %v203 = vld [vmem:[%s138 + $0x100] sm:$0xff]
        %v204 = vld [vmem:[%s138 + $0x108] sm:$0xff]
        %v205 = vld [vmem:[%s138 + $0x110] sm:$0xff]
        %v206 = vld [vmem:[%s138 + $0x118] sm:$0xff]
        %v207 = vld [vmem:[%s138 + $0x120] sm:$0xff]
        %v208 = vld [vmem:[%s138 + $0x128] sm:$0xff]
        %v209 = vld [vmem:[%s138 + $0x130] sm:$0xff]
        %v210 = vld [vmem:[%s138 + $0x150] sm:$0xff]
        %v211 = vld [vmem:[%s138 + $0x158] sm:$0xff]
        %v212 = vld [vmem:[%s138 + $0x160] sm:$0xff]
        %v213 = vld [vmem:[%s138 + $0x168] sm:$0xff]
        %v214 = vld [vmem:[%s138 + $0x170] sm:$0xff]
        %v215 = vld [vmem:[%s138 + $0x178] sm:$0xff]
        %v216 = vld [vmem:[%s138 + $0x180] sm:$0xff]
        %v217 = vld [vmem:[%s138 + $0x188] sm:$0xff]
        %v218 = vld [vmem:[%s138 + $0x190] sm:$0xff]
        %v219 = vld [vmem:[%s138 + $0x198] sm:$0xff]
        %v220 = vld [vmem:[%s138 + $0x1a0] sm:$0xff]
        %v221 = vld [vmem:[%s138 + $0x1a8] sm:$0xff]
        %v222 = vld [vmem:[%s138 + $0x1b0] sm:$0xff]
        %v223 = vld [vmem:[%s138 + $0x1b8] sm:$0xff]
        %v224 = vld [vmem:[%s138 + $0x1c0] sm:$0xff]
        %v225 = vld [vmem:[%s138 + $0x1c8] sm:$0xff]
        %v226 = vld [vmem:[%s138 + $0x1d0] sm:$0xff]
        %v227 = vld [vmem:[%s138 + $0x1d8] sm:$0xff]
        %v228 = vld [vmem:[%s138 + $0x1f8] sm:$0xff]
        %v229 = vld [vmem:[%s138 + $0x200] sm:$0xff]
        %v230 = vld [vmem:[%s138 + $0x208] sm:$0xff]
        %v231 = vld [vmem:[%s138 + $0x210] sm:$0xff]
        %v232 = vld [vmem:[%s138 + $0x218] sm:$0xff]
        %v233 = vld [vmem:[%s138 + $0x220] sm:$0xff]
        %v234 = vld [vmem:[%s138 + $0x228] sm:$0xff]
        %v235 = vld [vmem:[%s138 + $0x230] sm:$0xff]
        %v236 = vld [vmem:[%s138 + $0x238] sm:$0xff]
        %v237 = vld [vmem:[%s138 + $0x240] sm:$0xff]
        %v238 = vld [vmem:[%s138 + $0x248] sm:$0xff]
        %v239 = vld [vmem:[%s138 + $0x250] sm:$0xff]
        %v240 = vld [vmem:[%s138 + $0x258] sm:$0xff]
        %v241 = vld [vmem:[%s138 + $0x260] sm:$0xff]
        %v242 = vld [vmem:[%s138 + $0x268] sm:$0xff]
        %v243 = vld [vmem:[%s138 + $0x270] sm:$0xff]
        %v244 = vld [vmem:[%s138 + $0x278] sm:$0xff]
        %v245 = vld [vmem:[%s138 + $0x280] sm:$0xff]
        %v246 = vld [vmem:[%s138 + $0x2a0] sm:$0xff]
        %v247 = vld [vmem:[%s138 + $0x2a8] sm:$0xff]
        %v248 = vld [vmem:[%s138 + $0x2b0] sm:$0xff]
        %v249 = vld [vmem:[%s138 + $0x2b8] sm:$0xff]
        %v250 = vld [vmem:[%s138 + $0x2c0] sm:$0xff]
        %v251 = vld [vmem:[%s138 + $0x2c8] sm:$0xff]
        %v252 = vld [vmem:[%s138 + $0x2d0] sm:$0xff]
        %v253 = vld [vmem:[%s138 + $0x2d8] sm:$0xff]
        %v254 = vld [vmem:[%s138 + $0x2e0] sm:$0xff]
        %v255 = vld [vmem:[%s138 + $0x2e8] sm:$0xff]
        %v256 = vld [vmem:[%s138 + $0x2f0] sm:$0xff]
        %v257 = vld [vmem:[%s138 + $0x2f8] sm:$0xff]
        %v258 = vld [vmem:[%s138 + $0x300] sm:$0xff]
        %v259 = vld [vmem:[%s138 + $0x308] sm:$0xff]
        %v260 = vld [vmem:[%s138 + $0x310] sm:$0xff]
        %v261 = vld [vmem:[%s138 + $0x318] sm:$0xff]
        %v262 = vld [vmem:[%s138 + $0x320] sm:$0xff]
        %v263 = vld [vmem:[%s138 + $0x328] sm:$0xff]
        %v264 = vld [vmem:[%s138 + $0x348] sm:$0xff]
        %v265 = vld [vmem:[%s138 + $0x350] sm:$0xff]
        %v266 = vld [vmem:[%s138 + $0x358] sm:$0xff]
        %v267 = vld [vmem:[%s138 + $0x360] sm:$0xff]
        %v268 = vld [vmem:[%s138 + $0x368] sm:$0xff]
        %v269 = vld [vmem:[%s138 + $0x370] sm:$0xff]
        %v270 = vld [vmem:[%s138 + $0x378] sm:$0xff]
        %v271 = vld [vmem:[%s138 + $0x380] sm:$0xff]
        %v272 = vld [vmem:[%s138 + $0x388] sm:$0xff]
        %v273 = vld [vmem:[%s138 + $0x390] sm:$0xff]
        %v274 = vld [vmem:[%s138 + $0x398] sm:$0xff]
        %v275 = vld [vmem:[%s138 + $0x3a0] sm:$0xff]
        %v276 = vld [vmem:[%s138 + $0x3a8] sm:$0xff]
        %v277 = vld [vmem:[%s138 + $0x3b0] sm:$0xff]
        %v278 = vld [vmem:[%s138 + $0x3b8] sm:$0xff]
        %v279 = vld [vmem:[%s138 + $0x3c0] sm:$0xff]
        %v280 = vld [vmem:[%s138 + $0x3c8] sm:$0xff]
        %v281 = vld [vmem:[%s138 + $0x3d0] sm:$0xff]
        %v282 = vld [vmem:[%s138] sm:$0xfe]
        %v283 = vld [vmem:[%s138 + $0x8] sm:$0xfe]
        %v284 = vld [vmem:[%s138 + $0x10] sm:$0xfe]
        %v285 = vld [vmem:[%s138 + $0x18] sm:$0xff]
        %v286 = vld [vmem:[%s138 + $0x20] sm:$0xff]
        %v287 = vld [vmem:[%s138 + $0x28] sm:$0xff]
        %v288 = vld [vmem:[%s138 + $0x30] sm:$0xff]
        %v289 = vld [vmem:[%s138 + $0x38] sm:$0xff]
        %v290 = vld [vmem:[%s138 + $0x40] sm:$0xff]
        %v291 = vld [vmem:[%s138 + $0x48] sm:$0xff]
        %v292 = vld [vmem:[%s138 + $0x50] sm:$0xff]
        %v293 = vld [vmem:[%s138 + $0x58] sm:$0xff]
        %v294 = vld [vmem:[%s138 + $0x60] sm:$0xff]
        %v295 = vld [vmem:[%s138 + $0x68] sm:$0xff]
        %v296 = vld [vmem:[%s138 + $0x70] sm:$0xff]
        %v297 = vld [vmem:[%s138 + $0x78] sm:$0xff]
        %v298 = vld [vmem:[%s138 + $0x80] sm:$0xff]
        %v299 = vld [vmem:[%s138 + $0x88] sm:$0xff]
        %v300 = vld [vmem:[%s138 + $0x90] sm:$0x1]
        %v301 = vld [vmem:[%s138 + $0x98] sm:$0x1]
        %v302 = vld [vmem:[%s138 + $0xa0] sm:$0x1]
        %v303 = vld [vmem:[%s138 + $0xa8] sm:$0xfe]
        %v304 = vld [vmem:[%s138 + $0xb0] sm:$0xfe]
        %v305 = vld [vmem:[%s138 + $0xb8] sm:$0xfe]
        %v306 = vld [vmem:[%s138 + $0xc0] sm:$0xff]
        %v307 = vld [vmem:[%s138 + $0xc8] sm:$0xff]
        %v308 = vld [vmem:[%s138 + $0xd0] sm:$0xff]
        %v309 = vld [vmem:[%s138 + $0xd8] sm:$0xff]
        %v310 = vld [vmem:[%s138 + $0xe0] sm:$0xff]
        %v311 = vld [vmem:[%s138 + $0xe8] sm:$0xff]
        %v312 = vld [vmem:[%s138 + $0xf0] sm:$0xff]
        %v313 = vld [vmem:[%s138 + $0xf8] sm:$0xff]
        %v314 = vld [vmem:[%s138 + $0x100] sm:$0xff]
        %v315 = vld [vmem:[%s138 + $0x108] sm:$0xff]
        %v316 = vld [vmem:[%s138 + $0x110] sm:$0xff]
        %v317 = vld [vmem:[%s138 + $0x118] sm:$0xff]
        %v318 = vld [vmem:[%s138 + $0x120] sm:$0xff]
        %v319 = vld [vmem:[%s138 + $0x128] sm:$0xff]
        %v320 = vld [vmem:[%s138 + $0x130] sm:$0xff]
        %v321 = vld [vmem:[%s138 + $0x138] sm:$0x1]
        %v322 = vld [vmem:[%s138 + $0x140] sm:$0x1]
        %v323 = vld [vmem:[%s138 + $0x148] sm:$0x1]
        %v324 = vld [vmem:[%s138 + $0x150] sm:$0xfe]
        %v325 = vld [vmem:[%s138 + $0x158] sm:$0xfe]
        %v326 = vld [vmem:[%s138 + $0x160] sm:$0xfe]
        %v327 = vld [vmem:[%s138 + $0x168] sm:$0xff]
        %v328 = vld [vmem:[%s138 + $0x170] sm:$0xff]
        %v329 = vld [vmem:[%s138 + $0x178] sm:$0xff]
        %v330 = vld [vmem:[%s138 + $0x180] sm:$0xff]
        %v331 = vld [vmem:[%s138 + $0x188] sm:$0xff]
        %v332 = vld [vmem:[%s138 + $0x190] sm:$0xff]
        %v333 = vld [vmem:[%s138 + $0x198] sm:$0xff]
        %v334 = vld [vmem:[%s138 + $0x1a0] sm:$0xff]
        %v335 = vld [vmem:[%s138 + $0x1a8] sm:$0xff]
        %v336 = vld [vmem:[%s138 + $0x1b0] sm:$0xff]
        %v337 = vld [vmem:[%s138 + $0x1b8] sm:$0xff]
        %v338 = vld [vmem:[%s138 + $0x1c0] sm:$0xff]
        %v339 = vld [vmem:[%s138 + $0x1c8] sm:$0xff]
        %v340 = vld [vmem:[%s138 + $0x1d0] sm:$0xff]
        %v341 = vld [vmem:[%s138 + $0x1d8] sm:$0xff]
        %v342 = vld [vmem:[%s138 + $0x1e0] sm:$0x1]
        %v343 = vld [vmem:[%s138 + $0x1e8] sm:$0x1]
        %v344 = vld [vmem:[%s138 + $0x1f0] sm:$0x1]
        %v345 = vld [vmem:[%s138 + $0x1f8] sm:$0xfe]
        %v346 = vld [vmem:[%s138 + $0x200] sm:$0xfe]
        %v347 = vld [vmem:[%s138 + $0x208] sm:$0xfe]
        %v348 = vld [vmem:[%s138 + $0x210] sm:$0xff]
        %v349 = vld [vmem:[%s138 + $0x218] sm:$0xff]
        %v350 = vld [vmem:[%s138 + $0x220] sm:$0xff]
        %v351 = vld [vmem:[%s138 + $0x228] sm:$0xff]
        %v352 = vld [vmem:[%s138 + $0x230] sm:$0xff]
        %v353 = vld [vmem:[%s138 + $0x238] sm:$0xff]
        %v354 = vld [vmem:[%s138 + $0x240] sm:$0xff]
        %v355 = vld [vmem:[%s138 + $0x248] sm:$0xff]
        %v356 = vld [vmem:[%s138 + $0x250] sm:$0xff]
        %v357 = vld [vmem:[%s138 + $0x258] sm:$0xff]
        %v358 = vld [vmem:[%s138 + $0x260] sm:$0xff]
        %v359 = vld [vmem:[%s138 + $0x268] sm:$0xff]
        %v360 = vld [vmem:[%s138 + $0x270] sm:$0xff]
        %v361 = vld [vmem:[%s138 + $0x278] sm:$0xff]
        %v362 = vld [vmem:[%s138 + $0x280] sm:$0xff]
        %v363 = vld [vmem:[%s138 + $0x288] sm:$0x1]
        %v364 = vld [vmem:[%s138 + $0x290] sm:$0x1]
        %v365 = vld [vmem:[%s138 + $0x298] sm:$0x1]
        %v366 = vld [vmem:[%s138 + $0x2a0] sm:$0xfe]
        %v367 = vld [vmem:[%s138 + $0x2a8] sm:$0xfe]
        %v368 = vld [vmem:[%s138 + $0x2b0] sm:$0xfe]
        %v369 = vld [vmem:[%s138 + $0x2b8] sm:$0xff]
        %v370 = vld [vmem:[%s138 + $0x2c0] sm:$0xff]
        %v371 = vld [vmem:[%s138 + $0x2c8] sm:$0xff]
        %v372 = vld [vmem:[%s138 + $0x2d0] sm:$0xff]
        %v373 = vld [vmem:[%s138 + $0x2d8] sm:$0xff]
        %v374 = vld [vmem:[%s138 + $0x2e0] sm:$0xff]
        %v375 = vld [vmem:[%s138 + $0x2e8] sm:$0xff]
        %v376 = vld [vmem:[%s138 + $0x2f0] sm:$0xff]
        %v377 = vld [vmem:[%s138 + $0x2f8] sm:$0xff]
        %v378 = vld [vmem:[%s138 + $0x300] sm:$0xff]
        %v379 = vld [vmem:[%s138 + $0x308] sm:$0xff]
        %v380 = vld [vmem:[%s138 + $0x310] sm:$0xff]
        %v381 = vld [vmem:[%s138 + $0x318] sm:$0xff]
        %v382 = vld [vmem:[%s138 + $0x320] sm:$0xff]
        %v383 = vld [vmem:[%s138 + $0x328] sm:$0xff]
        %v384 = vld [vmem:[%s138 + $0x330] sm:$0x1]
        %v385 = vld [vmem:[%s138 + $0x338] sm:$0x1]
        %v386 = vld [vmem:[%s138 + $0x340] sm:$0x1]
        %v387 = vld [vmem:[%s138 + $0x348] sm:$0xfe]
        %v388 = vld [vmem:[%s138 + $0x350] sm:$0xfe]
        %v389 = vld [vmem:[%s138 + $0x358] sm:$0xfe]
        %v390 = vld [vmem:[%s138 + $0x360] sm:$0xff]
        %v391 = vld [vmem:[%s138 + $0x368] sm:$0xff]
        %v392 = vld [vmem:[%s138 + $0x370] sm:$0xff]
        %v393 = vld [vmem:[%s138 + $0x378] sm:$0xff]
        %v394 = vld [vmem:[%s138 + $0x380] sm:$0xff]
        %v395 = vld [vmem:[%s138 + $0x388] sm:$0xff]
        %v396 = vld [vmem:[%s138 + $0x390] sm:$0xff]
        %v397 = vld [vmem:[%s138 + $0x398] sm:$0xff]
        %v398 = vld [vmem:[%s138 + $0x3a0] sm:$0xff]
        %v399 = vld [vmem:[%s138 + $0x3a8] sm:$0xff]
        %v400 = vld [vmem:[%s138 + $0x3b0] sm:$0xff]
        %v401 = vld [vmem:[%s138 + $0x3b8] sm:$0xff]
        %v402 = vld [vmem:[%s138 + $0x3c0] sm:$0xff]
        %v403 = vld [vmem:[%s138 + $0x3c8] sm:$0xff]
        %v404 = vld [vmem:[%s138 + $0x3d0] sm:$0xff]
        %v405 = vld [vmem:[%s138 + $0x3d8] sm:$0x1]
        %v406 = vld [vmem:[%s138 + $0x3e0] sm:$0x1]
        %v407 = vld [vmem:[%s138 + $0x3e8] sm:$0x1]
        %vm516 = vcmask 1040384
        %v517 = vrot.slane %v174, 7
        %v518 = vrot.slane %v175, 7
        %v519 = vrot.slane %v176, 7
        %v520 = vrot.slane %v177, 7
        %v521 = vsel %vm516, %v517, %v520
        %v522 = vrot.slane %v178, 7
        %v523 = vsel %vm516, %v518, %v522
        %v524 = vrot.slane %v179, 7
        %v525 = vsel %vm516, %v519, %v524
        %v526 = vrot.slane %v180, 7
        %v527 = vsel %vm516, %v520, %v526
        %v528 = vrot.slane %v181, 7
        %v529 = vsel %vm516, %v522, %v528
        %v530 = vrot.slane %v182, 7
        %v531 = vsel %vm516, %v524, %v530
        %v532 = vrot.slane %v183, 7
        %v533 = vsel %vm516, %v526, %v532
        %v534 = vrot.slane %v184, 7
        %v535 = vsel %vm516, %v528, %v534
        %v536 = vrot.slane %v185, 7
        %v537 = vsel %vm516, %v530, %v536
        %v538 = vrot.slane %v186, 7
        %v539 = vsel %vm516, %v532, %v538
        %v540 = vrot.slane %v187, 7
        %v541 = vsel %vm516, %v534, %v540
        %v542 = vrot.slane %v188, 7
        %v543 = vsel %vm516, %v536, %v542
        %v544 = vrot.slane %v189, 7
        %v545 = vsel %vm516, %v538, %v544
        %v546 = vrot.slane %v190, 7
        %v547 = vsel %vm516, %v540, %v546
        %v548 = vrot.slane %v191, 7
        %v549 = vsel %vm516, %v542, %v548
        %v550 = vrot.slane %v192, 7
        %v551 = vrot.slane %v193, 7
        %v552 = vrot.slane %v194, 7
        %v553 = vrot.slane %v195, 7
        %v554 = vsel %vm516, %v550, %v553
        %v555 = vrot.slane %v196, 7
        %v556 = vsel %vm516, %v551, %v555
        %v557 = vrot.slane %v197, 7
        %v558 = vsel %vm516, %v552, %v557
        %v559 = vrot.slane %v198, 7
        %v560 = vsel %vm516, %v553, %v559
        %v561 = vrot.slane %v199, 7
        %v562 = vsel %vm516, %v555, %v561
        %v563 = vrot.slane %v200, 7
        %v564 = vsel %vm516, %v557, %v563
        %v565 = vrot.slane %v201, 7
        %v566 = vsel %vm516, %v559, %v565
        %v567 = vrot.slane %v202, 7
        %v568 = vsel %vm516, %v561, %v567
        %v569 = vrot.slane %v203, 7
        %v570 = vsel %vm516, %v563, %v569
        %v571 = vrot.slane %v204, 7
        %v572 = vsel %vm516, %v565, %v571
        %v573 = vrot.slane %v205, 7
        %v574 = vsel %vm516, %v567, %v573
        %v575 = vrot.slane %v206, 7
        %v576 = vsel %vm516, %v569, %v575
        %v577 = vrot.slane %v207, 7
        %v578 = vsel %vm516, %v571, %v577
        %v579 = vrot.slane %v208, 7
        %v580 = vsel %vm516, %v573, %v579
        %v581 = vrot.slane %v209, 7
        %v582 = vsel %vm516, %v575, %v581
        %v583 = vrot.slane %v210, 7
        %v584 = vrot.slane %v211, 7
        %v585 = vrot.slane %v212, 7
        %v586 = vrot.slane %v213, 7
        %v587 = vsel %vm516, %v583, %v586
        %v588 = vrot.slane %v214, 7
        %v589 = vsel %vm516, %v584, %v588
        %v590 = vrot.slane %v215, 7
        %v591 = vsel %vm516, %v585, %v590
        %v592 = vrot.slane %v216, 7
        %v593 = vsel %vm516, %v586, %v592
        %v594 = vrot.slane %v217, 7
        %v595 = vsel %vm516, %v588, %v594
        %v596 = vrot.slane %v218, 7
        %v597 = vsel %vm516, %v590, %v596
        %v598 = vrot.slane %v219, 7
        %v599 = vsel %vm516, %v592, %v598
        %v600 = vrot.slane %v220, 7
        %v601 = vsel %vm516, %v594, %v600
        %v602 = vrot.slane %v221, 7
        %v603 = vsel %vm516, %v596, %v602
        %v604 = vrot.slane %v222, 7
        %v605 = vsel %vm516, %v598, %v604
        %v606 = vrot.slane %v223, 7
        %v607 = vsel %vm516, %v600, %v606
        %v608 = vrot.slane %v224, 7
        %v609 = vsel %vm516, %v602, %v608
        %v610 = vrot.slane %v225, 7
        %v611 = vsel %vm516, %v604, %v610
        %v612 = vrot.slane %v226, 7
        %v613 = vsel %vm516, %v606, %v612
        %v614 = vrot.slane %v227, 7
        %v615 = vsel %vm516, %v608, %v614
        %v616 = vrot.slane %v228, 7
        %v617 = vrot.slane %v229, 7
        %v618 = vrot.slane %v230, 7
        %v619 = vrot.slane %v231, 7
        %v620 = vsel %vm516, %v616, %v619
        %v621 = vrot.slane %v232, 7
        %v622 = vsel %vm516, %v617, %v621
        %v623 = vrot.slane %v233, 7
        %v624 = vsel %vm516, %v618, %v623
        %v625 = vrot.slane %v234, 7
        %v626 = vsel %vm516, %v619, %v625
        %v627 = vrot.slane %v235, 7
        %v628 = vsel %vm516, %v621, %v627
        %v629 = vrot.slane %v236, 7
        %v630 = vsel %vm516, %v623, %v629
        %v631 = vrot.slane %v237, 7
        %v632 = vsel %vm516, %v625, %v631
        %v633 = vrot.slane %v238, 7
        %v634 = vsel %vm516, %v627, %v633
        %v635 = vrot.slane %v239, 7
        %v636 = vsel %vm516, %v629, %v635
        %v637 = vrot.slane %v240, 7
        %v638 = vsel %vm516, %v631, %v637
        %v639 = vrot.slane %v241, 7
        %v640 = vsel %vm516, %v633, %v639
        %v641 = vrot.slane %v242, 7
        %v642 = vsel %vm516, %v635, %v641
        %v643 = vrot.slane %v243, 7
        %v644 = vsel %vm516, %v637, %v643
        %v645 = vrot.slane %v244, 7
        %v646 = vsel %vm516, %v639, %v645
        %v647 = vrot.slane %v245, 7
        %v648 = vsel %vm516, %v641, %v647
        %v649 = vrot.slane %v246, 7
        %v650 = vrot.slane %v247, 7
        %v651 = vrot.slane %v248, 7
        %v652 = vrot.slane %v249, 7
        %v653 = vsel %vm516, %v649, %v652
        %v654 = vrot.slane %v250, 7
        %v655 = vsel %vm516, %v650, %v654
        %v656 = vrot.slane %v251, 7
        %v657 = vsel %vm516, %v651, %v656
        %v658 = vrot.slane %v252, 7
        %v659 = vsel %vm516, %v652, %v658
        %v660 = vrot.slane %v253, 7
        %v661 = vsel %vm516, %v654, %v660
        %v662 = vrot.slane %v254, 7
        %v663 = vsel %vm516, %v656, %v662
        %v664 = vrot.slane %v255, 7
        %v665 = vsel %vm516, %v658, %v664
        %v666 = vrot.slane %v256, 7
        %v667 = vsel %vm516, %v660, %v666
        %v668 = vrot.slane %v257, 7
        %v669 = vsel %vm516, %v662, %v668
        %v670 = vrot.slane %v258, 7
        %v671 = vsel %vm516, %v664, %v670
        %v672 = vrot.slane %v259, 7
        %v673 = vsel %vm516, %v666, %v672
        %v674 = vrot.slane %v260, 7
        %v675 = vsel %vm516, %v668, %v674
        %v676 = vrot.slane %v261, 7
        %v677 = vsel %vm516, %v670, %v676
        %v678 = vrot.slane %v262, 7
        %v679 = vsel %vm516, %v672, %v678
        %v680 = vrot.slane %v263, 7
        %v681 = vsel %vm516, %v674, %v680
        %v682 = vrot.slane %v264, 7
        %v683 = vrot.slane %v265, 7
        %v684 = vrot.slane %v266, 7
        %v685 = vrot.slane %v267, 7
        %v686 = vsel %vm516, %v682, %v685
        %v687 = vrot.slane %v268, 7
        %v688 = vsel %vm516, %v683, %v687
        %v689 = vrot.slane %v269, 7
        %v690 = vsel %vm516, %v684, %v689
        %v691 = vrot.slane %v270, 7
        %v692 = vsel %vm516, %v685, %v691
        %v693 = vrot.slane %v271, 7
        %v694 = vsel %vm516, %v687, %v693
        %v695 = vrot.slane %v272, 7
        %v696 = vsel %vm516, %v689, %v695
        %v697 = vrot.slane %v273, 7
        %v698 = vsel %vm516, %v691, %v697
        %v699 = vrot.slane %v274, 7
        %v700 = vsel %vm516, %v693, %v699
        %v701 = vrot.slane %v275, 7
        %v702 = vsel %vm516, %v695, %v701
        %v703 = vrot.slane %v276, 7
        %v704 = vsel %vm516, %v697, %v703
        %v705 = vrot.slane %v277, 7
        %v706 = vsel %vm516, %v699, %v705
        %v707 = vrot.slane %v278, 7
        %v708 = vsel %vm516, %v701, %v707
        %v709 = vrot.slane %v279, 7
        %v710 = vsel %vm516, %v703, %v709
        %v711 = vrot.slane %v280, 7
        %v712 = vsel %vm516, %v705, %v711
        %v713 = vrot.slane %v281, 7
        %v714 = vsel %vm516, %v707, %v713
        %v841 = vsub.f32 %v282, %v517
        %v842 = vsub.f32 %v283, %v518
        %v843 = vsub.f32 %v284, %v519
        %v844 = vsub.f32 %v285, %v521
        %v845 = vsub.f32 %v286, %v523
        %v846 = vsub.f32 %v287, %v525
        %v847 = vsub.f32 %v288, %v527
        %v848 = vsub.f32 %v289, %v529
        %v849 = vsub.f32 %v290, %v531
        %v850 = vsub.f32 %v291, %v533
        %v851 = vsub.f32 %v292, %v535
        %v852 = vsub.f32 %v293, %v537
        %v853 = vsub.f32 %v294, %v539
        %v854 = vsub.f32 %v295, %v541
        %v855 = vsub.f32 %v296, %v543
        %v856 = vsub.f32 %v297, %v545
        %v857 = vsub.f32 %v298, %v547
        %v858 = vsub.f32 %v299, %v549
        %v859 = vsub.f32 %v300, %v544
        %v860 = vsub.f32 %v301, %v546
        %v861 = vsub.f32 %v302, %v548
        %v862 = vsub.f32 %v303, %v550
        %v863 = vsub.f32 %v304, %v551
        %v864 = vsub.f32 %v305, %v552
        %v865 = vsub.f32 %v306, %v554
        %v866 = vsub.f32 %v307, %v556
        %v867 = vsub.f32 %v308, %v558
        %v868 = vsub.f32 %v309, %v560
        %v869 = vsub.f32 %v310, %v562
        %v870 = vsub.f32 %v311, %v564
        %v871 = vsub.f32 %v312, %v566
        %v872 = vsub.f32 %v313, %v568
        %v873 = vsub.f32 %v314, %v570
        %v874 = vsub.f32 %v315, %v572
        %v875 = vsub.f32 %v316, %v574
        %v876 = vsub.f32 %v317, %v576
        %v877 = vsub.f32 %v318, %v578
        %v878 = vsub.f32 %v319, %v580
        %v879 = vsub.f32 %v320, %v582
        %v880 = vsub.f32 %v321, %v577
        %v881 = vsub.f32 %v322, %v579
        %v882 = vsub.f32 %v323, %v581
        %v883 = vsub.f32 %v324, %v583
        %v884 = vsub.f32 %v325, %v584
        %v885 = vsub.f32 %v326, %v585
        %v886 = vsub.f32 %v327, %v587
        %v887 = vsub.f32 %v328, %v589
        %v888 = vsub.f32 %v329, %v591
        %v889 = vsub.f32 %v330, %v593
        %v890 = vsub.f32 %v331, %v595
        %v891 = vsub.f32 %v332, %v597
        %v892 = vsub.f32 %v333, %v599
        %v893 = vsub.f32 %v334, %v601
        %v894 = vsub.f32 %v335, %v603
        %v895 = vsub.f32 %v336, %v605
        %v896 = vsub.f32 %v337, %v607
        %v897 = vsub.f32 %v338, %v609
        %v898 = vsub.f32 %v339, %v611
        %v899 = vsub.f32 %v340, %v613
        %v900 = vsub.f32 %v341, %v615
        %v901 = vsub.f32 %v342, %v610
        %v902 = vsub.f32 %v343, %v612
        %v903 = vsub.f32 %v344, %v614
        %v904 = vsub.f32 %v345, %v616
        %v905 = vsub.f32 %v346, %v617
        %v906 = vsub.f32 %v347, %v618
        %v907 = vsub.f32 %v348, %v620
        %v908 = vsub.f32 %v349, %v622
        %v909 = vsub.f32 %v350, %v624
        %v910 = vsub.f32 %v351, %v626
        %v911 = vsub.f32 %v352, %v628
        %v912 = vsub.f32 %v353, %v630
        %v913 = vsub.f32 %v354, %v632
        %v914 = vsub.f32 %v355, %v634
        %v915 = vsub.f32 %v356, %v636
        %v916 = vsub.f32 %v357, %v638
        %v917 = vsub.f32 %v358, %v640
        %v918 = vsub.f32 %v359, %v642
        %v919 = vsub.f32 %v360, %v644
        %v920 = vsub.f32 %v361, %v646
        %v921 = vsub.f32 %v362, %v648
        %v922 = vsub.f32 %v363, %v643
        %v923 = vsub.f32 %v364, %v645
        %v924 = vsub.f32 %v365, %v647
        %v925 = vsub.f32 %v366, %v649
        %v926 = vsub.f32 %v367, %v650
        %v927 = vsub.f32 %v368, %v651
        %v928 = vsub.f32 %v369, %v653
        %v929 = vsub.f32 %v370, %v655
        %v930 = vsub.f32 %v371, %v657
        %v931 = vsub.f32 %v372, %v659
        %v932 = vsub.f32 %v373, %v661
        %v933 = vsub.f32 %v374, %v663
        %v934 = vsub.f32 %v375, %v665
        %v935 = vsub.f32 %v376, %v667
        %v936 = vsub.f32 %v377, %v669
        %v937 = vsub.f32 %v378, %v671
        %v938 = vsub.f32 %v379, %v673
        %v939 = vsub.f32 %v380, %v675
        %v940 = vsub.f32 %v381, %v677
        %v941 = vsub.f32 %v382, %v679
        %v942 = vsub.f32 %v383, %v681
        %v943 = vsub.f32 %v384, %v676
        %v944 = vsub.f32 %v385, %v678
        %v945 = vsub.f32 %v386, %v680
        %v946 = vsub.f32 %v387, %v682
        %v947 = vsub.f32 %v388, %v683
        %v948 = vsub.f32 %v389, %v684
        %v949 = vsub.f32 %v390, %v686
        %v950 = vsub.f32 %v391, %v688
        %v951 = vsub.f32 %v392, %v690
        %v952 = vsub.f32 %v393, %v692
        %v953 = vsub.f32 %v394, %v694
        %v954 = vsub.f32 %v395, %v696
        %v955 = vsub.f32 %v396, %v698
        %v956 = vsub.f32 %v397, %v700
        %v957 = vsub.f32 %v398, %v702
        %v958 = vsub.f32 %v399, %v704
        %v959 = vsub.f32 %v400, %v706
        %v960 = vsub.f32 %v401, %v708
        %v961 = vsub.f32 %v402, %v710
        %v962 = vsub.f32 %v403, %v712
        %v963 = vsub.f32 %v404, %v714
        %v964 = vsub.f32 %v405, %v709
        %v965 = vsub.f32 %v406, %v711
        %v966 = vsub.f32 %v407, %v713
        %v967 = vstv %s153
        %v968 = vmul.f32 %v967, %v841
        %v969 = vmul.f32 %v967, %v842
        %v970 = vmul.f32 %v967, %v843
        %v971 = vmul.f32 %v967, %v844
        %v972 = vmul.f32 %v967, %v845
        %v973 = vmul.f32 %v967, %v846
        %v974 = vmul.f32 %v967, %v847
        %v975 = vmul.f32 %v967, %v848
        %v976 = vmul.f32 %v967, %v849
        %v977 = vmul.f32 %v967, %v850
        %v978 = vmul.f32 %v967, %v851
        %v979 = vmul.f32 %v967, %v852
        %v980 = vmul.f32 %v967, %v853
        %v981 = vmul.f32 %v967, %v854
        %v982 = vmul.f32 %v967, %v855
        %v983 = vmul.f32 %v967, %v856
        %v984 = vmul.f32 %v967, %v857
        %v985 = vmul.f32 %v967, %v858
        %v986 = vmul.f32 %v967, %v859
        %v987 = vmul.f32 %v967, %v860
        %v988 = vmul.f32 %v967, %v861
        %v989 = vmul.f32 %v967, %v862
        %v990 = vmul.f32 %v967, %v863
        %v991 = vmul.f32 %v967, %v864
        %v992 = vmul.f32 %v967, %v865
        %v993 = vmul.f32 %v967, %v866
        %v994 = vmul.f32 %v967, %v867
        %v995 = vmul.f32 %v967, %v868
        %v996 = vmul.f32 %v967, %v869
        %v997 = vmul.f32 %v967, %v870
        %v998 = vmul.f32 %v967, %v871
        %v999 = vmul.f32 %v967, %v872
        %v1000 = vmul.f32 %v967, %v873
        %v1001 = vmul.f32 %v967, %v874
        %v1002 = vmul.f32 %v967, %v875
        %v1003 = vmul.f32 %v967, %v876
        %v1004 = vmul.f32 %v967, %v877
        %v1005 = vmul.f32 %v967, %v878
        %v1006 = vmul.f32 %v967, %v879
        %v1007 = vmul.f32 %v967, %v880
        %v1008 = vmul.f32 %v967, %v881
        %v1009 = vmul.f32 %v967, %v882
        %v1010 = vmul.f32 %v967, %v883
        %v1011 = vmul.f32 %v967, %v884
        %v1012 = vmul.f32 %v967, %v885
        %v1013 = vmul.f32 %v967, %v886
        %v1014 = vmul.f32 %v967, %v887
        %v1015 = vmul.f32 %v967, %v888
        %v1016 = vmul.f32 %v967, %v889
        %v1017 = vmul.f32 %v967, %v890
        %v1018 = vmul.f32 %v967, %v891
        %v1019 = vmul.f32 %v967, %v892
        %v1020 = vmul.f32 %v967, %v893
        %v1021 = vmul.f32 %v967, %v894
        %v1022 = vmul.f32 %v967, %v895
        %v1023 = vmul.f32 %v967, %v896
        %v1024 = vmul.f32 %v967, %v897
        %v1025 = vmul.f32 %v967, %v898
        %v1026 = vmul.f32 %v967, %v899
        %v1027 = vmul.f32 %v967, %v900
        %v1028 = vmul.f32 %v967, %v901
        %v1029 = vmul.f32 %v967, %v902
        %v1030 = vmul.f32 %v967, %v903
        %v1031 = vmul.f32 %v967, %v904
        %v1032 = vmul.f32 %v967, %v905
        %v1033 = vmul.f32 %v967, %v906
        %v1034 = vmul.f32 %v967, %v907
        %v1035 = vmul.f32 %v967, %v908
        %v1036 = vmul.f32 %v967, %v909
        %v1037 = vmul.f32 %v967, %v910
        %v1038 = vmul.f32 %v967, %v911
        %v1039 = vmul.f32 %v967, %v912
        %v1040 = vmul.f32 %v967, %v913
        %v1041 = vmul.f32 %v967, %v914
        %v1042 = vmul.f32 %v967, %v915
        %v1043 = vmul.f32 %v967, %v916
        %v1044 = vmul.f32 %v967, %v917
        %v1045 = vmul.f32 %v967, %v918
        %v1046 = vmul.f32 %v967, %v919
        %v1047 = vmul.f32 %v967, %v920
        %v1048 = vmul.f32 %v967, %v921
        %v1049 = vmul.f32 %v967, %v922
        %v1050 = vmul.f32 %v967, %v923
        %v1051 = vmul.f32 %v967, %v924
        %v1052 = vmul.f32 %v967, %v925
        %v1053 = vmul.f32 %v967, %v926
        %v1054 = vmul.f32 %v967, %v927
        %v1055 = vmul.f32 %v967, %v928
        %v1056 = vmul.f32 %v967, %v929
        %v1057 = vmul.f32 %v967, %v930
        %v1058 = vmul.f32 %v967, %v931
        %v1059 = vmul.f32 %v967, %v932
        %v1060 = vmul.f32 %v967, %v933
        %v1061 = vmul.f32 %v967, %v934
        %v1062 = vmul.f32 %v967, %v935
        %v1063 = vmul.f32 %v967, %v936
        %v1064 = vmul.f32 %v967, %v937
        %v1065 = vmul.f32 %v967, %v938
        %v1066 = vmul.f32 %v967, %v939
        %v1067 = vmul.f32 %v967, %v940
        %v1068 = vmul.f32 %v967, %v941
        %v1069 = vmul.f32 %v967, %v942
        %v1070 = vmul.f32 %v967, %v943
        %v1071 = vmul.f32 %v967, %v944
        %v1072 = vmul.f32 %v967, %v945
        %v1073 = vmul.f32 %v967, %v946
        %v1074 = vmul.f32 %v967, %v947
        %v1075 = vmul.f32 %v967, %v948
        %v1076 = vmul.f32 %v967, %v949
        %v1077 = vmul.f32 %v967, %v950
        %v1078 = vmul.f32 %v967, %v951
        %v1079 = vmul.f32 %v967, %v952
        %v1080 = vmul.f32 %v967, %v953
        %v1081 = vmul.f32 %v967, %v954
        %v1082 = vmul.f32 %v967, %v955
        %v1083 = vmul.f32 %v967, %v956
        %v1084 = vmul.f32 %v967, %v957
        %v1085 = vmul.f32 %v967, %v958
        %v1086 = vmul.f32 %v967, %v959
        %v1087 = vmul.f32 %v967, %v960
        %v1088 = vmul.f32 %v967, %v961
        %v1089 = vmul.f32 %v967, %v962
        %v1090 = vmul.f32 %v967, %v963
        %v1091 = vmul.f32 %v967, %v964
        %v1092 = vmul.f32 %v967, %v965
        %v1093 = vmul.f32 %v967, %v966
        %vm1220 = vcmask 1046528
        %v1221 = vrot.slane %v968, 1
        %v1222 = vrot.slane %v971, 1
        %v1223 = vsel %vm1220, %v1221, %v1222
        %v1224 = vrot.slane %v969, 1
        %v1225 = vrot.slane %v972, 1
        %v1226 = vsel %vm1220, %v1224, %v1225
        %v1227 = vrot.slane %v970, 1
        %v1228 = vrot.slane %v973, 1
        %v1229 = vsel %vm1220, %v1227, %v1228
        %v1230 = vrot.slane %v974, 1
        %v1231 = vsel %vm1220, %v1222, %v1230
        %v1232 = vrot.slane %v975, 1
        %v1233 = vsel %vm1220, %v1225, %v1232
        %v1234 = vrot.slane %v976, 1
        %v1235 = vsel %vm1220, %v1228, %v1234
        %v1236 = vrot.slane %v977, 1
        %v1237 = vsel %vm1220, %v1230, %v1236
        %v1238 = vrot.slane %v978, 1
        %v1239 = vsel %vm1220, %v1232, %v1238
        %v1240 = vrot.slane %v979, 1
        %v1241 = vsel %vm1220, %v1234, %v1240
        %v1242 = vrot.slane %v980, 1
        %v1243 = vsel %vm1220, %v1236, %v1242
        %v1244 = vrot.slane %v981, 1
        %v1245 = vsel %vm1220, %v1238, %v1244
        %v1246 = vrot.slane %v982, 1
        %v1247 = vsel %vm1220, %v1240, %v1246
        %v1248 = vrot.slane %v983, 1
        %v1249 = vsel %vm1220, %v1242, %v1248
        %v1250 = vrot.slane %v984, 1
        %v1251 = vsel %vm1220, %v1244, %v1250
        %v1252 = vrot.slane %v985, 1
        %v1253 = vsel %vm1220, %v1246, %v1252
        %v1254 = vrot.slane %v986, 1
        %v1255 = vsel %vm1220, %v1248, %v1254
        %v1256 = vrot.slane %v987, 1
        %v1257 = vsel %vm1220, %v1250, %v1256
        %v1258 = vrot.slane %v988, 1
        %v1259 = vsel %vm1220, %v1252, %v1258
        %v1260 = vrot.slane %v989, 1
        %v1261 = vrot.slane %v992, 1
        %v1262 = vsel %vm1220, %v1260, %v1261
        %v1263 = vrot.slane %v990, 1
        %v1264 = vrot.slane %v993, 1
        %v1265 = vsel %vm1220, %v1263, %v1264
        %v1266 = vrot.slane %v991, 1
        %v1267 = vrot.slane %v994, 1
        %v1268 = vsel %vm1220, %v1266, %v1267
        %v1269 = vrot.slane %v995, 1
        %v1270 = vsel %vm1220, %v1261, %v1269
        %v1271 = vrot.slane %v996, 1
        %v1272 = vsel %vm1220, %v1264, %v1271
        %v1273 = vrot.slane %v997, 1
        %v1274 = vsel %vm1220, %v1267, %v1273
        %v1275 = vrot.slane %v998, 1
        %v1276 = vsel %vm1220, %v1269, %v1275
        %v1277 = vrot.slane %v999, 1
        %v1278 = vsel %vm1220, %v1271, %v1277
        %v1279 = vrot.slane %v1000, 1
        %v1280 = vsel %vm1220, %v1273, %v1279
        %v1281 = vrot.slane %v1001, 1
        %v1282 = vsel %vm1220, %v1275, %v1281
        %v1283 = vrot.slane %v1002, 1
        %v1284 = vsel %vm1220, %v1277, %v1283
        %v1285 = vrot.slane %v1003, 1
        %v1286 = vsel %vm1220, %v1279, %v1285
        %v1287 = vrot.slane %v1004, 1
        %v1288 = vsel %vm1220, %v1281, %v1287
        %v1289 = vrot.slane %v1005, 1
        %v1290 = vsel %vm1220, %v1283, %v1289
        %v1291 = vrot.slane %v1006, 1
        %v1292 = vsel %vm1220, %v1285, %v1291
        %v1293 = vrot.slane %v1007, 1
        %v1294 = vsel %vm1220, %v1287, %v1293
        %v1295 = vrot.slane %v1008, 1
        %v1296 = vsel %vm1220, %v1289, %v1295
        %v1297 = vrot.slane %v1009, 1
        %v1298 = vsel %vm1220, %v1291, %v1297
        %v1299 = vrot.slane %v1010, 1
        %v1300 = vrot.slane %v1013, 1
        %v1301 = vsel %vm1220, %v1299, %v1300
        %v1302 = vrot.slane %v1011, 1
        %v1303 = vrot.slane %v1014, 1
        %v1304 = vsel %vm1220, %v1302, %v1303
        %v1305 = vrot.slane %v1012, 1
        %v1306 = vrot.slane %v1015, 1
        %v1307 = vsel %vm1220, %v1305, %v1306
        %v1308 = vrot.slane %v1016, 1
        %v1309 = vsel %vm1220, %v1300, %v1308
        %v1310 = vrot.slane %v1017, 1
        %v1311 = vsel %vm1220, %v1303, %v1310
        %v1312 = vrot.slane %v1018, 1
        %v1313 = vsel %vm1220, %v1306, %v1312
        %v1314 = vrot.slane %v1019, 1
        %v1315 = vsel %vm1220, %v1308, %v1314
        %v1316 = vrot.slane %v1020, 1
        %v1317 = vsel %vm1220, %v1310, %v1316
        %v1318 = vrot.slane %v1021, 1
        %v1319 = vsel %vm1220, %v1312, %v1318
        %v1320 = vrot.slane %v1022, 1
        %v1321 = vsel %vm1220, %v1314, %v1320
        %v1322 = vrot.slane %v1023, 1
        %v1323 = vsel %vm1220, %v1316, %v1322
        %v1324 = vrot.slane %v1024, 1
        %v1325 = vsel %vm1220, %v1318, %v1324
        %v1326 = vrot.slane %v1025, 1
        %v1327 = vsel %vm1220, %v1320, %v1326
        %v1328 = vrot.slane %v1026, 1
        %v1329 = vsel %vm1220, %v1322, %v1328
        %v1330 = vrot.slane %v1027, 1
        %v1331 = vsel %vm1220, %v1324, %v1330
        %v1332 = vrot.slane %v1028, 1
        %v1333 = vsel %vm1220, %v1326, %v1332
        %v1334 = vrot.slane %v1029, 1
        %v1335 = vsel %vm1220, %v1328, %v1334
        %v1336 = vrot.slane %v1030, 1
        %v1337 = vsel %vm1220, %v1330, %v1336
        %v1338 = vrot.slane %v1031, 1
        %v1339 = vrot.slane %v1034, 1
        %v1340 = vsel %vm1220, %v1338, %v1339
        %v1341 = vrot.slane %v1032, 1
        %v1342 = vrot.slane %v1035, 1
        %v1343 = vsel %vm1220, %v1341, %v1342
        %v1344 = vrot.slane %v1033, 1
        %v1345 = vrot.slane %v1036, 1
        %v1346 = vsel %vm1220, %v1344, %v1345
        %v1347 = vrot.slane %v1037, 1
        %v1348 = vsel %vm1220, %v1339, %v1347
        %v1349 = vrot.slane %v1038, 1
        %v1350 = vsel %vm1220, %v1342, %v1349
        %v1351 = vrot.slane %v1039, 1
        %v1352 = vsel %vm1220, %v1345, %v1351
        %v1353 = vrot.slane %v1040, 1
        %v1354 = vsel %vm1220, %v1347, %v1353
        %v1355 = vrot.slane %v1041, 1
        %v1356 = vsel %vm1220, %v1349, %v1355
        %v1357 = vrot.slane %v1042, 1
        %v1358 = vsel %vm1220, %v1351, %v1357
        %v1359 = vrot.slane %v1043, 1
        %v1360 = vsel %vm1220, %v1353, %v1359
        %v1361 = vrot.slane %v1044, 1
        %v1362 = vsel %vm1220, %v1355, %v1361
        %v1363 = vrot.slane %v1045, 1
        %v1364 = vsel %vm1220, %v1357, %v1363
        %v1365 = vrot.slane %v1046, 1
        %v1366 = vsel %vm1220, %v1359, %v1365
        %v1367 = vrot.slane %v1047, 1
        %v1368 = vsel %vm1220, %v1361, %v1367
        %v1369 = vrot.slane %v1048, 1
        %v1370 = vsel %vm1220, %v1363, %v1369
        %v1371 = vrot.slane %v1049, 1
        %v1372 = vsel %vm1220, %v1365, %v1371
        %v1373 = vrot.slane %v1050, 1
        %v1374 = vsel %vm1220, %v1367, %v1373
        %v1375 = vrot.slane %v1051, 1
        %v1376 = vsel %vm1220, %v1369, %v1375
        %v1377 = vrot.slane %v1052, 1
        %v1378 = vrot.slane %v1055, 1
        %v1379 = vsel %vm1220, %v1377, %v1378
        %v1380 = vrot.slane %v1053, 1
        %v1381 = vrot.slane %v1056, 1
        %v1382 = vsel %vm1220, %v1380, %v1381
        %v1383 = vrot.slane %v1054, 1
        %v1384 = vrot.slane %v1057, 1
        %v1385 = vsel %vm1220, %v1383, %v1384
        %v1386 = vrot.slane %v1058, 1
        %v1387 = vsel %vm1220, %v1378, %v1386
        %v1388 = vrot.slane %v1059, 1
        %v1389 = vsel %vm1220, %v1381, %v1388
        %v1390 = vrot.slane %v1060, 1
        %v1391 = vsel %vm1220, %v1384, %v1390
        %v1392 = vrot.slane %v1061, 1
        %v1393 = vsel %vm1220, %v1386, %v1392
        %v1394 = vrot.slane %v1062, 1
        %v1395 = vsel %vm1220, %v1388, %v1394
        %v1396 = vrot.slane %v1063, 1
        %v1397 = vsel %vm1220, %v1390, %v1396
        %v1398 = vrot.slane %v1064, 1
        %v1399 = vsel %vm1220, %v1392, %v1398
        %v1400 = vrot.slane %v1065, 1
        %v1401 = vsel %vm1220, %v1394, %v1400
        %v1402 = vrot.slane %v1066, 1
        %v1403 = vsel %vm1220, %v1396, %v1402
        %v1404 = vrot.slane %v1067, 1
        %v1405 = vsel %vm1220, %v1398, %v1404
        %v1406 = vrot.slane %v1068, 1
        %v1407 = vsel %vm1220, %v1400, %v1406
        %v1408 = vrot.slane %v1069, 1
        %v1409 = vsel %vm1220, %v1402, %v1408
        %v1410 = vrot.slane %v1070, 1
        %v1411 = vsel %vm1220, %v1404, %v1410
        %v1412 = vrot.slane %v1071, 1
        %v1413 = vsel %vm1220, %v1406, %v1412
        %v1414 = vrot.slane %v1072, 1
        %v1415 = vsel %vm1220, %v1408, %v1414
        %v1416 = vrot.slane %v1073, 1
        %v1417 = vrot.slane %v1076, 1
        %v1418 = vsel %vm1220, %v1416, %v1417
        %v1419 = vrot.slane %v1074, 1
        %v1420 = vrot.slane %v1077, 1
        %v1421 = vsel %vm1220, %v1419, %v1420
        %v1422 = vrot.slane %v1075, 1
        %v1423 = vrot.slane %v1078, 1
        %v1424 = vsel %vm1220, %v1422, %v1423
        %v1425 = vrot.slane %v1079, 1
        %v1426 = vsel %vm1220, %v1417, %v1425
        %v1427 = vrot.slane %v1080, 1
        %v1428 = vsel %vm1220, %v1420, %v1427
        %v1429 = vrot.slane %v1081, 1
        %v1430 = vsel %vm1220, %v1423, %v1429
        %v1431 = vrot.slane %v1082, 1
        %v1432 = vsel %vm1220, %v1425, %v1431
        %v1433 = vrot.slane %v1083, 1
        %v1434 = vsel %vm1220, %v1427, %v1433
        %v1435 = vrot.slane %v1084, 1
        %v1436 = vsel %vm1220, %v1429, %v1435
        %v1437 = vrot.slane %v1085, 1
        %v1438 = vsel %vm1220, %v1431, %v1437
        %v1439 = vrot.slane %v1086, 1
        %v1440 = vsel %vm1220, %v1433, %v1439
        %v1441 = vrot.slane %v1087, 1
        %v1442 = vsel %vm1220, %v1435, %v1441
        %v1443 = vrot.slane %v1088, 1
        %v1444 = vsel %vm1220, %v1437, %v1443
        %v1445 = vrot.slane %v1089, 1
        %v1446 = vsel %vm1220, %v1439, %v1445
        %v1447 = vrot.slane %v1090, 1
        %v1448 = vsel %vm1220, %v1441, %v1447
        %v1449 = vrot.slane %v1091, 1
        %v1450 = vsel %vm1220, %v1443, %v1449
        %v1451 = vrot.slane %v1092, 1
        %v1452 = vsel %vm1220, %v1445, %v1451
        %v1453 = vrot.slane %v1093, 1
        %v1454 = vsel %vm1220, %v1447, %v1453
        %v1563 = vadd.f32 %v174, %v1223
        %v1564 = vadd.f32 %v175, %v1226
        %v1565 = vadd.f32 %v176, %v1229
        %v1566 = vadd.f32 %v177, %v1231
        %v1567 = vadd.f32 %v178, %v1233
        %v1568 = vadd.f32 %v179, %v1235
        %v1569 = vadd.f32 %v180, %v1237
        %v1570 = vadd.f32 %v181, %v1239
        %v1571 = vadd.f32 %v182, %v1241
        %v1572 = vadd.f32 %v183, %v1243
        %v1573 = vadd.f32 %v184, %v1245
        %v1574 = vadd.f32 %v185, %v1247
        %v1575 = vadd.f32 %v186, %v1249
        %v1576 = vadd.f32 %v187, %v1251
        %v1577 = vadd.f32 %v188, %v1253
        %v1578 = vadd.f32 %v189, %v1255
        %v1579 = vadd.f32 %v190, %v1257
        %v1580 = vadd.f32 %v191, %v1259
        %v1581 = vadd.f32 %v192, %v1262
        %v1582 = vadd.f32 %v193, %v1265
        %v1583 = vadd.f32 %v194, %v1268
        %v1584 = vadd.f32 %v195, %v1270
        %v1585 = vadd.f32 %v196, %v1272
        %v1586 = vadd.f32 %v197, %v1274
        %v1587 = vadd.f32 %v198, %v1276
        %v1588 = vadd.f32 %v199, %v1278
        %v1589 = vadd.f32 %v200, %v1280
        %v1590 = vadd.f32 %v201, %v1282
        %v1591 = vadd.f32 %v202, %v1284
        %v1592 = vadd.f32 %v203, %v1286
        %v1593 = vadd.f32 %v204, %v1288
        %v1594 = vadd.f32 %v205, %v1290
        %v1595 = vadd.f32 %v206, %v1292
        %v1596 = vadd.f32 %v207, %v1294
        %v1597 = vadd.f32 %v208, %v1296
        %v1598 = vadd.f32 %v209, %v1298
        %v1599 = vadd.f32 %v210, %v1301
        %v1600 = vadd.f32 %v211, %v1304
        %v1601 = vadd.f32 %v212, %v1307
        %v1602 = vadd.f32 %v213, %v1309
        %v1603 = vadd.f32 %v214, %v1311
        %v1604 = vadd.f32 %v215, %v1313
        %v1605 = vadd.f32 %v216, %v1315
        %v1606 = vadd.f32 %v217, %v1317
        %v1607 = vadd.f32 %v218, %v1319
        %v1608 = vadd.f32 %v219, %v1321
        %v1609 = vadd.f32 %v220, %v1323
        %v1610 = vadd.f32 %v221, %v1325
        %v1611 = vadd.f32 %v222, %v1327
        %v1612 = vadd.f32 %v223, %v1329
        %v1613 = vadd.f32 %v224, %v1331
        %v1614 = vadd.f32 %v225, %v1333
        %v1615 = vadd.f32 %v226, %v1335
        %v1616 = vadd.f32 %v227, %v1337
        %v1617 = vadd.f32 %v228, %v1340
        %v1618 = vadd.f32 %v229, %v1343
        %v1619 = vadd.f32 %v230, %v1346
        %v1620 = vadd.f32 %v231, %v1348
        %v1621 = vadd.f32 %v232, %v1350
        %v1622 = vadd.f32 %v233, %v1352
        %v1623 = vadd.f32 %v234, %v1354
        %v1624 = vadd.f32 %v235, %v1356
        %v1625 = vadd.f32 %v236, %v1358
        %v1626 = vadd.f32 %v237, %v1360
        %v1627 = vadd.f32 %v238, %v1362
        %v1628 = vadd.f32 %v239, %v1364
        %v1629 = vadd.f32 %v240, %v1366
        %v1630 = vadd.f32 %v241, %v1368
        %v1631 = vadd.f32 %v242, %v1370
        %v1632 = vadd.f32 %v243, %v1372
        %v1633 = vadd.f32 %v244, %v1374
        %v1634 = vadd.f32 %v245, %v1376
        %v1635 = vadd.f32 %v246, %v1379
        %v1636 = vadd.f32 %v247, %v1382
        %v1637 = vadd.f32 %v248, %v1385
        %v1638 = vadd.f32 %v249, %v1387
        %v1639 = vadd.f32 %v250, %v1389
        %v1640 = vadd.f32 %v251, %v1391
        %v1641 = vadd.f32 %v252, %v1393
        %v1642 = vadd.f32 %v253, %v1395
        %v1643 = vadd.f32 %v254, %v1397
        %v1644 = vadd.f32 %v255, %v1399
        %v1645 = vadd.f32 %v256, %v1401
        %v1646 = vadd.f32 %v257, %v1403
        %v1647 = vadd.f32 %v258, %v1405
        %v1648 = vadd.f32 %v259, %v1407
        %v1649 = vadd.f32 %v260, %v1409
        %v1650 = vadd.f32 %v261, %v1411
        %v1651 = vadd.f32 %v262, %v1413
        %v1652 = vadd.f32 %v263, %v1415
        %v1653 = vadd.f32 %v264, %v1418
        %v1654 = vadd.f32 %v265, %v1421
        %v1655 = vadd.f32 %v266, %v1424
        %v1656 = vadd.f32 %v267, %v1426
        %v1657 = vadd.f32 %v268, %v1428
        %v1658 = vadd.f32 %v269, %v1430
        %v1659 = vadd.f32 %v270, %v1432
        %v1660 = vadd.f32 %v271, %v1434
        %v1661 = vadd.f32 %v272, %v1436
        %v1662 = vadd.f32 %v273, %v1438
        %v1663 = vadd.f32 %v274, %v1440
        %v1664 = vadd.f32 %v275, %v1442
        %v1665 = vadd.f32 %v276, %v1444
        %v1666 = vadd.f32 %v277, %v1446
        %v1667 = vadd.f32 %v278, %v1448
        %v1668 = vadd.f32 %v279, %v1450
        %v1669 = vadd.f32 %v280, %v1452
        %v1670 = vadd.f32 %v281, %v1454
        %1743 = vrot.lane.b32.xlu0 %v1563, 1
        %v1744 = vpop.permute.xlu0 %1743
        %1745 = vrot.lane.b32.xlu0 %v1564, 1
        %v1746 = vpop.permute.xlu0 %1745
        %1747 = vrot.lane.b32.xlu0 %v1566, 1
        %v1748 = vpop.permute.xlu0 %1747
        %1749 = vrot.lane.b32.xlu0 %v1567, 1
        %v1750 = vpop.permute.xlu0 %1749
        %1751 = vrot.lane.b32.xlu0 %v1569, 1
        %v1752 = vpop.permute.xlu0 %1751
        %1753 = vrot.lane.b32.xlu0 %v1570, 1
        %v1754 = vpop.permute.xlu0 %1753
        %1755 = vrot.lane.b32.xlu0 %v1572, 1
        %v1756 = vpop.permute.xlu0 %1755
        %1757 = vrot.lane.b32.xlu0 %v1573, 1
        %v1758 = vpop.permute.xlu0 %1757
        %1759 = vrot.lane.b32.xlu0 %v1575, 1
        %v1760 = vpop.permute.xlu0 %1759
        %1761 = vrot.lane.b32.xlu0 %v1576, 1
        %v1762 = vpop.permute.xlu0 %1761
        %1763 = vrot.lane.b32.xlu0 %v1578, 1
        %v1764 = vpop.permute.xlu0 %1763
        %1765 = vrot.lane.b32.xlu0 %v1579, 1
        %v1766 = vpop.permute.xlu0 %1765
        %1767 = vrot.lane.b32.xlu0 %v1581, 1
        %v1768 = vpop.permute.xlu0 %1767
        %1769 = vrot.lane.b32.xlu0 %v1582, 1
        %v1770 = vpop.permute.xlu0 %1769
        %1771 = vrot.lane.b32.xlu0 %v1584, 1
        %v1772 = vpop.permute.xlu0 %1771
        %1773 = vrot.lane.b32.xlu0 %v1585, 1
        %v1774 = vpop.permute.xlu0 %1773
        %1775 = vrot.lane.b32.xlu0 %v1587, 1
        %v1776 = vpop.permute.xlu0 %1775
        %1777 = vrot.lane.b32.xlu0 %v1588, 1
        %v1778 = vpop.permute.xlu0 %1777
        %1779 = vrot.lane.b32.xlu0 %v1590, 1
        %v1780 = vpop.permute.xlu0 %1779
        %1781 = vrot.lane.b32.xlu0 %v1591, 1
        %v1782 = vpop.permute.xlu0 %1781
        %1783 = vrot.lane.b32.xlu0 %v1593, 1
        %v1784 = vpop.permute.xlu0 %1783
        %1785 = vrot.lane.b32.xlu0 %v1594, 1
        %v1786 = vpop.permute.xlu0 %1785
        %1787 = vrot.lane.b32.xlu0 %v1596, 1
        %v1788 = vpop.permute.xlu0 %1787
        %1789 = vrot.lane.b32.xlu0 %v1597, 1
        %v1790 = vpop.permute.xlu0 %1789
        %1791 = vrot.lane.b32.xlu0 %v1599, 1
        %v1792 = vpop.permute.xlu0 %1791
        %1793 = vrot.lane.b32.xlu0 %v1600, 1
        %v1794 = vpop.permute.xlu0 %1793
        %1795 = vrot.lane.b32.xlu0 %v1602, 1
        %v1796 = vpop.permute.xlu0 %1795
        %1797 = vrot.lane.b32.xlu0 %v1603, 1
        %v1798 = vpop.permute.xlu0 %1797
        %1799 = vrot.lane.b32.xlu0 %v1605, 1
        %v1800 = vpop.permute.xlu0 %1799
        %1801 = vrot.lane.b32.xlu0 %v1606, 1
        %v1802 = vpop.permute.xlu0 %1801
        %1803 = vrot.lane.b32.xlu0 %v1608, 1
        %v1804 = vpop.permute.xlu0 %1803
        %1805 = vrot.lane.b32.xlu0 %v1609, 1
        %v1806 = vpop.permute.xlu0 %1805
        %1807 = vrot.lane.b32.xlu0 %v1611, 1
        %v1808 = vpop.permute.xlu0 %1807
        %1809 = vrot.lane.b32.xlu0 %v1612, 1
        %v1810 = vpop.permute.xlu0 %1809
        %1811 = vrot.lane.b32.xlu0 %v1614, 1
        %v1812 = vpop.permute.xlu0 %1811
        %1813 = vrot.lane.b32.xlu0 %v1615, 1
        %v1814 = vpop.permute.xlu0 %1813
        %1815 = vrot.lane.b32.xlu0 %v1617, 1
        %v1816 = vpop.permute.xlu0 %1815
        %1817 = vrot.lane.b32.xlu0 %v1618, 1
        %v1818 = vpop.permute.xlu0 %1817
        %1819 = vrot.lane.b32.xlu0 %v1620, 1
        %v1820 = vpop.permute.xlu0 %1819
        %1821 = vrot.lane.b32.xlu0 %v1621, 1
        %v1822 = vpop.permute.xlu0 %1821
        %1823 = vrot.lane.b32.xlu0 %v1623, 1
        %v1824 = vpop.permute.xlu0 %1823
        %1825 = vrot.lane.b32.xlu0 %v1624, 1
        %v1826 = vpop.permute.xlu0 %1825
        %1827 = vrot.lane.b32.xlu0 %v1626, 1
        %v1828 = vpop.permute.xlu0 %1827
        %1829 = vrot.lane.b32.xlu0 %v1627, 1
        %v1830 = vpop.permute.xlu0 %1829
        %1831 = vrot.lane.b32.xlu0 %v1629, 1
        %v1832 = vpop.permute.xlu0 %1831
        %1833 = vrot.lane.b32.xlu0 %v1630, 1
        %v1834 = vpop.permute.xlu0 %1833
        %1835 = vrot.lane.b32.xlu0 %v1632, 1
        %v1836 = vpop.permute.xlu0 %1835
        %1837 = vrot.lane.b32.xlu0 %v1633, 1
        %v1838 = vpop.permute.xlu0 %1837
        %1839 = vrot.lane.b32.xlu0 %v1635, 1
        %v1840 = vpop.permute.xlu0 %1839
        %1841 = vrot.lane.b32.xlu0 %v1636, 1
        %v1842 = vpop.permute.xlu0 %1841
        %1843 = vrot.lane.b32.xlu0 %v1638, 1
        %v1844 = vpop.permute.xlu0 %1843
        %1845 = vrot.lane.b32.xlu0 %v1639, 1
        %v1846 = vpop.permute.xlu0 %1845
        %1847 = vrot.lane.b32.xlu0 %v1641, 1
        %v1848 = vpop.permute.xlu0 %1847
        %1849 = vrot.lane.b32.xlu0 %v1642, 1
        %v1850 = vpop.permute.xlu0 %1849
        %1851 = vrot.lane.b32.xlu0 %v1644, 1
        %v1852 = vpop.permute.xlu0 %1851
        %1853 = vrot.lane.b32.xlu0 %v1645, 1
        %v1854 = vpop.permute.xlu0 %1853
        %1855 = vrot.lane.b32.xlu0 %v1647, 1
        %v1856 = vpop.permute.xlu0 %1855
        %1857 = vrot.lane.b32.xlu0 %v1648, 1
        %v1858 = vpop.permute.xlu0 %1857
        %1859 = vrot.lane.b32.xlu0 %v1650, 1
        %v1860 = vpop.permute.xlu0 %1859
        %1861 = vrot.lane.b32.xlu0 %v1651, 1
        %v1862 = vpop.permute.xlu0 %1861
        %1863 = vrot.lane.b32.xlu0 %v1653, 1
        %v1864 = vpop.permute.xlu0 %1863
        %1865 = vrot.lane.b32.xlu0 %v1654, 1
        %v1866 = vpop.permute.xlu0 %1865
        %1867 = vrot.lane.b32.xlu0 %v1656, 1
        %v1868 = vpop.permute.xlu0 %1867
        %1869 = vrot.lane.b32.xlu0 %v1657, 1
        %v1870 = vpop.permute.xlu0 %1869
        %1871 = vrot.lane.b32.xlu0 %v1659, 1
        %v1872 = vpop.permute.xlu0 %1871
        %1873 = vrot.lane.b32.xlu0 %v1660, 1
        %v1874 = vpop.permute.xlu0 %1873
        %1875 = vrot.lane.b32.xlu0 %v1662, 1
        %v1876 = vpop.permute.xlu0 %1875
        %1877 = vrot.lane.b32.xlu0 %v1663, 1
        %v1878 = vpop.permute.xlu0 %1877
        %1879 = vrot.lane.b32.xlu0 %v1665, 1
        %v1880 = vpop.permute.xlu0 %1879
        %1881 = vrot.lane.b32.xlu0 %v1666, 1
        %v1882 = vpop.permute.xlu0 %1881
        %1883 = vrot.lane.b32.xlu0 %v1668, 1
        %v1884 = vpop.permute.xlu0 %1883
        %1885 = vrot.lane.b32.xlu0 %v1669, 1
        %v1886 = vpop.permute.xlu0 %1885
        %vm1887 = vcmask 7168
        %v1888 = vsel %vm1887, %v1744, %v1746
        %v1889 = vsel %vm1887, %v1748, %v1750
        %v1890 = vsel %vm1887, %v1752, %v1754
        %v1891 = vsel %vm1887, %v1756, %v1758
        %v1892 = vsel %vm1887, %v1760, %v1762
        %v1893 = vsel %vm1887, %v1764, %v1766
        %v1894 = vsel %vm1887, %v1768, %v1770
        %v1895 = vsel %vm1887, %v1772, %v1774
        %v1896 = vsel %vm1887, %v1776, %v1778
        %v1897 = vsel %vm1887, %v1780, %v1782
        %v1898 = vsel %vm1887, %v1784, %v1786
        %v1899 = vsel %vm1887, %v1788, %v1790
        %v1900 = vsel %vm1887, %v1792, %v1794
        %v1901 = vsel %vm1887, %v1796, %v1798
        %v1902 = vsel %vm1887, %v1800, %v1802
        %v1903 = vsel %vm1887, %v1804, %v1806
        %v1904 = vsel %vm1887, %v1808, %v1810
        %v1905 = vsel %vm1887, %v1812, %v1814
        %v1906 = vsel %vm1887, %v1816, %v1818
        %v1907 = vsel %vm1887, %v1820, %v1822
        %v1908 = vsel %vm1887, %v1824, %v1826
        %v1909 = vsel %vm1887, %v1828, %v1830
        %v1910 = vsel %vm1887, %v1832, %v1834
        %v1911 = vsel %vm1887, %v1836, %v1838
        %v1912 = vsel %vm1887, %v1840, %v1842
        %v1913 = vsel %vm1887, %v1844, %v1846
        %v1914 = vsel %vm1887, %v1848, %v1850
        %v1915 = vsel %vm1887, %v1852, %v1854
        %v1916 = vsel %vm1887, %v1856, %v1858
        %v1917 = vsel %vm1887, %v1860, %v1862
        %v1918 = vsel %vm1887, %v1864, %v1866
        %v1919 = vsel %vm1887, %v1868, %v1870
        %v1920 = vsel %vm1887, %v1872, %v1874
        %v1921 = vsel %vm1887, %v1876, %v1878
        %v1922 = vsel %vm1887, %v1880, %v1882
        %v1923 = vsel %vm1887, %v1884, %v1886
        %v2032 = vsub.f32 %v1563, %v1744
        %v2033 = vsub.f32 %v1564, %v1888
        %v2034 = vsub.f32 %v1565, %v1746
        %v2035 = vsub.f32 %v1566, %v1748
        %v2036 = vsub.f32 %v1567, %v1889
        %v2037 = vsub.f32 %v1568, %v1750
        %v2038 = vsub.f32 %v1569, %v1752
        %v2039 = vsub.f32 %v1570, %v1890
        %v2040 = vsub.f32 %v1571, %v1754
        %v2041 = vsub.f32 %v1572, %v1756
        %v2042 = vsub.f32 %v1573, %v1891
        %v2043 = vsub.f32 %v1574, %v1758
        %v2044 = vsub.f32 %v1575, %v1760
        %v2045 = vsub.f32 %v1576, %v1892
        %v2046 = vsub.f32 %v1577, %v1762
        %v2047 = vsub.f32 %v1578, %v1764
        %v2048 = vsub.f32 %v1579, %v1893
        %v2049 = vsub.f32 %v1580, %v1766
        %v2050 = vsub.f32 %v1581, %v1768
        %v2051 = vsub.f32 %v1582, %v1894
        %v2052 = vsub.f32 %v1583, %v1770
        %v2053 = vsub.f32 %v1584, %v1772
        %v2054 = vsub.f32 %v1585, %v1895
        %v2055 = vsub.f32 %v1586, %v1774
        %v2056 = vsub.f32 %v1587, %v1776
        %v2057 = vsub.f32 %v1588, %v1896
        %v2058 = vsub.f32 %v1589, %v1778
        %v2059 = vsub.f32 %v1590, %v1780
        %v2060 = vsub.f32 %v1591, %v1897
        %v2061 = vsub.f32 %v1592, %v1782
        %v2062 = vsub.f32 %v1593, %v1784
        %v2063 = vsub.f32 %v1594, %v1898
        %v2064 = vsub.f32 %v1595, %v1786
        %v2065 = vsub.f32 %v1596, %v1788
        %v2066 = vsub.f32 %v1597, %v1899
        %v2067 = vsub.f32 %v1598, %v1790
        %v2068 = vsub.f32 %v1599, %v1792
        %v2069 = vsub.f32 %v1600, %v1900
        %v2070 = vsub.f32 %v1601, %v1794
        %v2071 = vsub.f32 %v1602, %v1796
        %v2072 = vsub.f32 %v1603, %v1901
        %v2073 = vsub.f32 %v1604, %v1798
        %v2074 = vsub.f32 %v1605, %v1800
        %v2075 = vsub.f32 %v1606, %v1902
        %v2076 = vsub.f32 %v1607, %v1802
        %v2077 = vsub.f32 %v1608, %v1804
        %v2078 = vsub.f32 %v1609, %v1903
        %v2079 = vsub.f32 %v1610, %v1806
        %v2080 = vsub.f32 %v1611, %v1808
        %v2081 = vsub.f32 %v1612, %v1904
        %v2082 = vsub.f32 %v1613, %v1810
        %v2083 = vsub.f32 %v1614, %v1812
        %v2084 = vsub.f32 %v1615, %v1905
        %v2085 = vsub.f32 %v1616, %v1814
        %v2086 = vsub.f32 %v1617, %v1816
        %v2087 = vsub.f32 %v1618, %v1906
        %v2088 = vsub.f32 %v1619, %v1818
        %v2089 = vsub.f32 %v1620, %v1820
        %v2090 = vsub.f32 %v1621, %v1907
        %v2091 = vsub.f32 %v1622, %v1822
        %v2092 = vsub.f32 %v1623, %v1824
        %v2093 = vsub.f32 %v1624, %v1908
        %v2094 = vsub.f32 %v1625, %v1826
        %v2095 = vsub.f32 %v1626, %v1828
        %v2096 = vsub.f32 %v1627, %v1909
        %v2097 = vsub.f32 %v1628, %v1830
        %v2098 = vsub.f32 %v1629, %v1832
        %v2099 = vsub.f32 %v1630, %v1910
        %v2100 = vsub.f32 %v1631, %v1834
        %v2101 = vsub.f32 %v1632, %v1836
        %v2102 = vsub.f32 %v1633, %v1911
        %v2103 = vsub.f32 %v1634, %v1838
        %v2104 = vsub.f32 %v1635, %v1840
        %v2105 = vsub.f32 %v1636, %v1912
        %v2106 = vsub.f32 %v1637, %v1842
        %v2107 = vsub.f32 %v1638, %v1844
        %v2108 = vsub.f32 %v1639, %v1913
        %v2109 = vsub.f32 %v1640, %v1846
        %v2110 = vsub.f32 %v1641, %v1848
        %v2111 = vsub.f32 %v1642, %v1914
        %v2112 = vsub.f32 %v1643, %v1850
        %v2113 = vsub.f32 %v1644, %v1852
        %v2114 = vsub.f32 %v1645, %v1915
        %v2115 = vsub.f32 %v1646, %v1854
        %v2116 = vsub.f32 %v1647, %v1856
        %v2117 = vsub.f32 %v1648, %v1916
        %v2118 = vsub.f32 %v1649, %v1858
        %v2119 = vsub.f32 %v1650, %v1860
        %v2120 = vsub.f32 %v1651, %v1917
        %v2121 = vsub.f32 %v1652, %v1862
        %v2122 = vsub.f32 %v1653, %v1864
        %v2123 = vsub.f32 %v1654, %v1918
        %v2124 = vsub.f32 %v1655, %v1866
        %v2125 = vsub.f32 %v1656, %v1868
        %v2126 = vsub.f32 %v1657, %v1919
        %v2127 = vsub.f32 %v1658, %v1870
        %v2128 = vsub.f32 %v1659, %v1872
        %v2129 = vsub.f32 %v1660, %v1920
        %v2130 = vsub.f32 %v1661, %v1874
        %v2131 = vsub.f32 %v1662, %v1876
        %v2132 = vsub.f32 %v1663, %v1921
        %v2133 = vsub.f32 %v1664, %v1878
        %v2134 = vsub.f32 %v1665, %v1880
        %v2135 = vsub.f32 %v1666, %v1922
        %v2136 = vsub.f32 %v1667, %v1882
        %v2137 = vsub.f32 %v1668, %v1884
        %v2138 = vsub.f32 %v1669, %v1923
        %v2139 = vsub.f32 %v1670, %v1886
        %v2140 = vstv %s154
        %v2141 = vmul.f32 %v2140, %v2032
        %v2142 = vmul.f32 %v2140, %v2033
        %v2143 = vmul.f32 %v2140, %v2034
        %v2144 = vmul.f32 %v2140, %v2035
        %v2145 = vmul.f32 %v2140, %v2036
        %v2146 = vmul.f32 %v2140, %v2037
        %v2147 = vmul.f32 %v2140, %v2038
        %v2148 = vmul.f32 %v2140, %v2039
        %v2149 = vmul.f32 %v2140, %v2040
        %v2150 = vmul.f32 %v2140, %v2041
        %v2151 = vmul.f32 %v2140, %v2042
        %v2152 = vmul.f32 %v2140, %v2043
        %v2153 = vmul.f32 %v2140, %v2044
        %v2154 = vmul.f32 %v2140, %v2045
        %v2155 = vmul.f32 %v2140, %v2046
        %v2156 = vmul.f32 %v2140, %v2047
        %v2157 = vmul.f32 %v2140, %v2048
        %v2158 = vmul.f32 %v2140, %v2049
        %v2159 = vmul.f32 %v2140, %v2050
        %v2160 = vmul.f32 %v2140, %v2051
        %v2161 = vmul.f32 %v2140, %v2052
        %v2162 = vmul.f32 %v2140, %v2053
        %v2163 = vmul.f32 %v2140, %v2054
        %v2164 = vmul.f32 %v2140, %v2055
        %v2165 = vmul.f32 %v2140, %v2056
        %v2166 = vmul.f32 %v2140, %v2057
        %v2167 = vmul.f32 %v2140, %v2058
        %v2168 = vmul.f32 %v2140, %v2059
        %v2169 = vmul.f32 %v2140, %v2060
        %v2170 = vmul.f32 %v2140, %v2061
        %v2171 = vmul.f32 %v2140, %v2062
        %v2172 = vmul.f32 %v2140, %v2063
        %v2173 = vmul.f32 %v2140, %v2064
        %v2174 = vmul.f32 %v2140, %v2065
        %v2175 = vmul.f32 %v2140, %v2066
        %v2176 = vmul.f32 %v2140, %v2067
        %v2177 = vmul.f32 %v2140, %v2068
        %v2178 = vmul.f32 %v2140, %v2069
        %v2179 = vmul.f32 %v2140, %v2070
        %v2180 = vmul.f32 %v2140, %v2071
        %v2181 = vmul.f32 %v2140, %v2072
        %v2182 = vmul.f32 %v2140, %v2073
        %v2183 = vmul.f32 %v2140, %v2074
        %v2184 = vmul.f32 %v2140, %v2075
        %v2185 = vmul.f32 %v2140, %v2076
        %v2186 = vmul.f32 %v2140, %v2077
        %v2187 = vmul.f32 %v2140, %v2078
        %v2188 = vmul.f32 %v2140, %v2079
        %v2189 = vmul.f32 %v2140, %v2080
        %v2190 = vmul.f32 %v2140, %v2081
        %v2191 = vmul.f32 %v2140, %v2082
        %v2192 = vmul.f32 %v2140, %v2083
        %v2193 = vmul.f32 %v2140, %v2084
        %v2194 = vmul.f32 %v2140, %v2085
        %v2195 = vmul.f32 %v2140, %v2086
        %v2196 = vmul.f32 %v2140, %v2087
        %v2197 = vmul.f32 %v2140, %v2088
        %v2198 = vmul.f32 %v2140, %v2089
        %v2199 = vmul.f32 %v2140, %v2090
        %v2200 = vmul.f32 %v2140, %v2091
        %v2201 = vmul.f32 %v2140, %v2092
        %v2202 = vmul.f32 %v2140, %v2093
        %v2203 = vmul.f32 %v2140, %v2094
        %v2204 = vmul.f32 %v2140, %v2095
        %v2205 = vmul.f32 %v2140, %v2096
        %v2206 = vmul.f32 %v2140, %v2097
        %v2207 = vmul.f32 %v2140, %v2098
        %v2208 = vmul.f32 %v2140, %v2099
        %v2209 = vmul.f32 %v2140, %v2100
        %v2210 = vmul.f32 %v2140, %v2101
        %v2211 = vmul.f32 %v2140, %v2102
        %v2212 = vmul.f32 %v2140, %v2103
        %v2213 = vmul.f32 %v2140, %v2104
        %v2214 = vmul.f32 %v2140, %v2105
        %v2215 = vmul.f32 %v2140, %v2106
        %v2216 = vmul.f32 %v2140, %v2107
        %v2217 = vmul.f32 %v2140, %v2108
        %v2218 = vmul.f32 %v2140, %v2109
        %v2219 = vmul.f32 %v2140, %v2110
        %v2220 = vmul.f32 %v2140, %v2111
        %v2221 = vmul.f32 %v2140, %v2112
        %v2222 = vmul.f32 %v2140, %v2113
        %v2223 = vmul.f32 %v2140, %v2114
        %v2224 = vmul.f32 %v2140, %v2115
        %v2225 = vmul.f32 %v2140, %v2116
        %v2226 = vmul.f32 %v2140, %v2117
        %v2227 = vmul.f32 %v2140, %v2118
        %v2228 = vmul.f32 %v2140, %v2119
        %v2229 = vmul.f32 %v2140, %v2120
        %v2230 = vmul.f32 %v2140, %v2121
        %v2231 = vmul.f32 %v2140, %v2122
        %v2232 = vmul.f32 %v2140, %v2123
        %v2233 = vmul.f32 %v2140, %v2124
        %v2234 = vmul.f32 %v2140, %v2125
        %v2235 = vmul.f32 %v2140, %v2126
        %v2236 = vmul.f32 %v2140, %v2127
        %v2237 = vmul.f32 %v2140, %v2128
        %v2238 = vmul.f32 %v2140, %v2129
        %v2239 = vmul.f32 %v2140, %v2130
        %v2240 = vmul.f32 %v2140, %v2131
        %v2241 = vmul.f32 %v2140, %v2132
        %v2242 = vmul.f32 %v2140, %v2133
        %v2243 = vmul.f32 %v2140, %v2134
        %v2244 = vmul.f32 %v2140, %v2135
        %v2245 = vmul.f32 %v2140, %v2136
        %v2246 = vmul.f32 %v2140, %v2137
        %v2247 = vmul.f32 %v2140, %v2138
        %v2248 = vmul.f32 %v2140, %v2139
        %2357 = vrot.lane.b32.xlu0 %v2141, 127
        %v2358 = vpop.permute.xlu0 %2357
        %2359 = vrot.lane.b32.xlu0 %v2142, 127
        %v2360 = vpop.permute.xlu0 %2359
        %2361 = vrot.lane.b32.xlu0 %v2143, 127
        %v2362 = vpop.permute.xlu0 %2361
        %2363 = vrot.lane.b32.xlu0 %v2144, 127
        %v2364 = vpop.permute.xlu0 %2363
        %2365 = vrot.lane.b32.xlu0 %v2145, 127
        %v2366 = vpop.permute.xlu0 %2365
        %2367 = vrot.lane.b32.xlu0 %v2146, 127
        %v2368 = vpop.permute.xlu0 %2367
        %2369 = vrot.lane.b32.xlu0 %v2147, 127
        %v2370 = vpop.permute.xlu0 %2369
        %2371 = vrot.lane.b32.xlu0 %v2148, 127
        %v2372 = vpop.permute.xlu0 %2371
        %2373 = vrot.lane.b32.xlu0 %v2149, 127
        %v2374 = vpop.permute.xlu0 %2373
        %2375 = vrot.lane.b32.xlu0 %v2150, 127
        %v2376 = vpop.permute.xlu0 %2375
        %2377 = vrot.lane.b32.xlu0 %v2151, 127
        %v2378 = vpop.permute.xlu0 %2377
        %2379 = vrot.lane.b32.xlu0 %v2152, 127
        %v2380 = vpop.permute.xlu0 %2379
        %2381 = vrot.lane.b32.xlu0 %v2153, 127
        %v2382 = vpop.permute.xlu0 %2381
        %2383 = vrot.lane.b32.xlu0 %v2154, 127
        %v2384 = vpop.permute.xlu0 %2383
        %2385 = vrot.lane.b32.xlu0 %v2155, 127
        %v2386 = vpop.permute.xlu0 %2385
        %2387 = vrot.lane.b32.xlu0 %v2156, 127
        %v2388 = vpop.permute.xlu0 %2387
        %2389 = vrot.lane.b32.xlu0 %v2157, 127
        %v2390 = vpop.permute.xlu0 %2389
        %2391 = vrot.lane.b32.xlu0 %v2158, 127
        %v2392 = vpop.permute.xlu0 %2391
        %2393 = vrot.lane.b32.xlu0 %v2159, 127
        %v2394 = vpop.permute.xlu0 %2393
        %2395 = vrot.lane.b32.xlu0 %v2160, 127
        %v2396 = vpop.permute.xlu0 %2395
        %2397 = vrot.lane.b32.xlu0 %v2161, 127
        %v2398 = vpop.permute.xlu0 %2397
        %2399 = vrot.lane.b32.xlu0 %v2162, 127
        %v2400 = vpop.permute.xlu0 %2399
        %2401 = vrot.lane.b32.xlu0 %v2163, 127
        %v2402 = vpop.permute.xlu0 %2401
        %2403 = vrot.lane.b32.xlu0 %v2164, 127
        %v2404 = vpop.permute.xlu0 %2403
        %2405 = vrot.lane.b32.xlu0 %v2165, 127
        %v2406 = vpop.permute.xlu0 %2405
        %2407 = vrot.lane.b32.xlu0 %v2166, 127
        %v2408 = vpop.permute.xlu0 %2407
        %2409 = vrot.lane.b32.xlu0 %v2167, 127
        %v2410 = vpop.permute.xlu0 %2409
        %2411 = vrot.lane.b32.xlu0 %v2168, 127
        %v2412 = vpop.permute.xlu0 %2411
        %2413 = vrot.lane.b32.xlu0 %v2169, 127
        %v2414 = vpop.permute.xlu0 %2413
        %2415 = vrot.lane.b32.xlu0 %v2170, 127
        %v2416 = vpop.permute.xlu0 %2415
        %2417 = vrot.lane.b32.xlu0 %v2171, 127
        %v2418 = vpop.permute.xlu0 %2417
        %2419 = vrot.lane.b32.xlu0 %v2172, 127
        %v2420 = vpop.permute.xlu0 %2419
        %2421 = vrot.lane.b32.xlu0 %v2173, 127
        %v2422 = vpop.permute.xlu0 %2421
        %2423 = vrot.lane.b32.xlu0 %v2174, 127
        %v2424 = vpop.permute.xlu0 %2423
        %2425 = vrot.lane.b32.xlu0 %v2175, 127
        %v2426 = vpop.permute.xlu0 %2425
        %2427 = vrot.lane.b32.xlu0 %v2176, 127
        %v2428 = vpop.permute.xlu0 %2427
        %2429 = vrot.lane.b32.xlu0 %v2177, 127
        %v2430 = vpop.permute.xlu0 %2429
        %2431 = vrot.lane.b32.xlu0 %v2178, 127
        %v2432 = vpop.permute.xlu0 %2431
        %2433 = vrot.lane.b32.xlu0 %v2179, 127
        %v2434 = vpop.permute.xlu0 %2433
        %2435 = vrot.lane.b32.xlu0 %v2180, 127
        %v2436 = vpop.permute.xlu0 %2435
        %2437 = vrot.lane.b32.xlu0 %v2181, 127
        %v2438 = vpop.permute.xlu0 %2437
        %2439 = vrot.lane.b32.xlu0 %v2182, 127
        %v2440 = vpop.permute.xlu0 %2439
        %2441 = vrot.lane.b32.xlu0 %v2183, 127
        %v2442 = vpop.permute.xlu0 %2441
        %2443 = vrot.lane.b32.xlu0 %v2184, 127
        %v2444 = vpop.permute.xlu0 %2443
        %2445 = vrot.lane.b32.xlu0 %v2185, 127
        %v2446 = vpop.permute.xlu0 %2445
        %2447 = vrot.lane.b32.xlu0 %v2186, 127
        %v2448 = vpop.permute.xlu0 %2447
        %2449 = vrot.lane.b32.xlu0 %v2187, 127
        %v2450 = vpop.permute.xlu0 %2449
        %2451 = vrot.lane.b32.xlu0 %v2188, 127
        %v2452 = vpop.permute.xlu0 %2451
        %2453 = vrot.lane.b32.xlu0 %v2189, 127
        %v2454 = vpop.permute.xlu0 %2453
        %2455 = vrot.lane.b32.xlu0 %v2190, 127
        %v2456 = vpop.permute.xlu0 %2455
        %2457 = vrot.lane.b32.xlu0 %v2191, 127
        %v2458 = vpop.permute.xlu0 %2457
        %2459 = vrot.lane.b32.xlu0 %v2192, 127
        %v2460 = vpop.permute.xlu0 %2459
        %2461 = vrot.lane.b32.xlu0 %v2193, 127
        %v2462 = vpop.permute.xlu0 %2461
        %2463 = vrot.lane.b32.xlu0 %v2194, 127
        %v2464 = vpop.permute.xlu0 %2463
        %2465 = vrot.lane.b32.xlu0 %v2195, 127
        %v2466 = vpop.permute.xlu0 %2465
        %2467 = vrot.lane.b32.xlu0 %v2196, 127
        %v2468 = vpop.permute.xlu0 %2467
        %2469 = vrot.lane.b32.xlu0 %v2197, 127
        %v2470 = vpop.permute.xlu0 %2469
        %2471 = vrot.lane.b32.xlu0 %v2198, 127
        %v2472 = vpop.permute.xlu0 %2471
        %2473 = vrot.lane.b32.xlu0 %v2199, 127
        %v2474 = vpop.permute.xlu0 %2473
        %2475 = vrot.lane.b32.xlu0 %v2200, 127
        %v2476 = vpop.permute.xlu0 %2475
        %2477 = vrot.lane.b32.xlu0 %v2201, 127
        %v2478 = vpop.permute.xlu0 %2477
        %2479 = vrot.lane.b32.xlu0 %v2202, 127
        %v2480 = vpop.permute.xlu0 %2479
        %2481 = vrot.lane.b32.xlu0 %v2203, 127
        %v2482 = vpop.permute.xlu0 %2481
        %2483 = vrot.lane.b32.xlu0 %v2204, 127
        %v2484 = vpop.permute.xlu0 %2483
        %2485 = vrot.lane.b32.xlu0 %v2205, 127
        %v2486 = vpop.permute.xlu0 %2485
        %2487 = vrot.lane.b32.xlu0 %v2206, 127
        %v2488 = vpop.permute.xlu0 %2487
        %2489 = vrot.lane.b32.xlu0 %v2207, 127
        %v2490 = vpop.permute.xlu0 %2489
        %2491 = vrot.lane.b32.xlu0 %v2208, 127
        %v2492 = vpop.permute.xlu0 %2491
        %2493 = vrot.lane.b32.xlu0 %v2209, 127
        %v2494 = vpop.permute.xlu0 %2493
        %2495 = vrot.lane.b32.xlu0 %v2210, 127
        %v2496 = vpop.permute.xlu0 %2495
        %2497 = vrot.lane.b32.xlu0 %v2211, 127
        %v2498 = vpop.permute.xlu0 %2497
        %2499 = vrot.lane.b32.xlu0 %v2212, 127
        %v2500 = vpop.permute.xlu0 %2499
        %2501 = vrot.lane.b32.xlu0 %v2213, 127
        %v2502 = vpop.permute.xlu0 %2501
        %2503 = vrot.lane.b32.xlu0 %v2214, 127
        %v2504 = vpop.permute.xlu0 %2503
        %2505 = vrot.lane.b32.xlu0 %v2215, 127
        %v2506 = vpop.permute.xlu0 %2505
        %2507 = vrot.lane.b32.xlu0 %v2216, 127
        %v2508 = vpop.permute.xlu0 %2507
        %2509 = vrot.lane.b32.xlu0 %v2217, 127
        %v2510 = vpop.permute.xlu0 %2509
        %2511 = vrot.lane.b32.xlu0 %v2218, 127
        %v2512 = vpop.permute.xlu0 %2511
        %2513 = vrot.lane.b32.xlu0 %v2219, 127
        %v2514 = vpop.permute.xlu0 %2513
        %2515 = vrot.lane.b32.xlu0 %v2220, 127
        %v2516 = vpop.permute.xlu0 %2515
        %2517 = vrot.lane.b32.xlu0 %v2221, 127
        %v2518 = vpop.permute.xlu0 %2517
        %2519 = vrot.lane.b32.xlu0 %v2222, 127
        %v2520 = vpop.permute.xlu0 %2519
        %2521 = vrot.lane.b32.xlu0 %v2223, 127
        %v2522 = vpop.permute.xlu0 %2521
        %2523 = vrot.lane.b32.xlu0 %v2224, 127
        %v2524 = vpop.permute.xlu0 %2523
        %2525 = vrot.lane.b32.xlu0 %v2225, 127
        %v2526 = vpop.permute.xlu0 %2525
        %2527 = vrot.lane.b32.xlu0 %v2226, 127
        %v2528 = vpop.permute.xlu0 %2527
        %2529 = vrot.lane.b32.xlu0 %v2227, 127
        %v2530 = vpop.permute.xlu0 %2529
        %2531 = vrot.lane.b32.xlu0 %v2228, 127
        %v2532 = vpop.permute.xlu0 %2531
        %2533 = vrot.lane.b32.xlu0 %v2229, 127
        %v2534 = vpop.permute.xlu0 %2533
        %2535 = vrot.lane.b32.xlu0 %v2230, 127
        %v2536 = vpop.permute.xlu0 %2535
        %2537 = vrot.lane.b32.xlu0 %v2231, 127
        %v2538 = vpop.permute.xlu0 %2537
        %2539 = vrot.lane.b32.xlu0 %v2232, 127
        %v2540 = vpop.permute.xlu0 %2539
        %2541 = vrot.lane.b32.xlu0 %v2233, 127
        %v2542 = vpop.permute.xlu0 %2541
        %2543 = vrot.lane.b32.xlu0 %v2234, 127
        %v2544 = vpop.permute.xlu0 %2543
        %2545 = vrot.lane.b32.xlu0 %v2235, 127
        %v2546 = vpop.permute.xlu0 %2545
        %2547 = vrot.lane.b32.xlu0 %v2236, 127
        %v2548 = vpop.permute.xlu0 %2547
        %2549 = vrot.lane.b32.xlu0 %v2237, 127
        %v2550 = vpop.permute.xlu0 %2549
        %2551 = vrot.lane.b32.xlu0 %v2238, 127
        %v2552 = vpop.permute.xlu0 %2551
        %2553 = vrot.lane.b32.xlu0 %v2239, 127
        %v2554 = vpop.permute.xlu0 %2553
        %2555 = vrot.lane.b32.xlu0 %v2240, 127
        %v2556 = vpop.permute.xlu0 %2555
        %2557 = vrot.lane.b32.xlu0 %v2241, 127
        %v2558 = vpop.permute.xlu0 %2557
        %2559 = vrot.lane.b32.xlu0 %v2242, 127
        %v2560 = vpop.permute.xlu0 %2559
        %2561 = vrot.lane.b32.xlu0 %v2243, 127
        %v2562 = vpop.permute.xlu0 %2561
        %2563 = vrot.lane.b32.xlu0 %v2244, 127
        %v2564 = vpop.permute.xlu0 %2563
        %2565 = vrot.lane.b32.xlu0 %v2245, 127
        %v2566 = vpop.permute.xlu0 %2565
        %2567 = vrot.lane.b32.xlu0 %v2246, 127
        %v2568 = vpop.permute.xlu0 %2567
        %2569 = vrot.lane.b32.xlu0 %v2247, 127
        %v2570 = vpop.permute.xlu0 %2569
        %2571 = vrot.lane.b32.xlu0 %v2248, 127
        %v2572 = vpop.permute.xlu0 %2571
        %vm2573 = vcmask 1039360
        %v2574 = vsel %vm2573, %v2358, %v2360
        %v2575 = vsel %vm2573, %v2360, %v2362
        %v2576 = vsel %vm2573, %v2364, %v2366
        %v2577 = vsel %vm2573, %v2366, %v2368
        %v2578 = vsel %vm2573, %v2370, %v2372
        %v2579 = vsel %vm2573, %v2372, %v2374
        %v2580 = vsel %vm2573, %v2376, %v2378
        %v2581 = vsel %vm2573, %v2378, %v2380
        %v2582 = vsel %vm2573, %v2382, %v2384
        %v2583 = vsel %vm2573, %v2384, %v2386
        %v2584 = vsel %vm2573, %v2388, %v2390
        %v2585 = vsel %vm2573, %v2390, %v2392
        %v2586 = vsel %vm2573, %v2394, %v2396
        %v2587 = vsel %vm2573, %v2396, %v2398
        %v2588 = vsel %vm2573, %v2400, %v2402
        %v2589 = vsel %vm2573, %v2402, %v2404
        %v2590 = vsel %vm2573, %v2406, %v2408
        %v2591 = vsel %vm2573, %v2408, %v2410
        %v2592 = vsel %vm2573, %v2412, %v2414
        %v2593 = vsel %vm2573, %v2414, %v2416
        %v2594 = vsel %vm2573, %v2418, %v2420
        %v2595 = vsel %vm2573, %v2420, %v2422
        %v2596 = vsel %vm2573, %v2424, %v2426
        %v2597 = vsel %vm2573, %v2426, %v2428
        %v2598 = vsel %vm2573, %v2430, %v2432
        %v2599 = vsel %vm2573, %v2432, %v2434
        %v2600 = vsel %vm2573, %v2436, %v2438
        %v2601 = vsel %vm2573, %v2438, %v2440
        %v2602 = vsel %vm2573, %v2442, %v2444
        %v2603 = vsel %vm2573, %v2444, %v2446
        %v2604 = vsel %vm2573, %v2448, %v2450
        %v2605 = vsel %vm2573, %v2450, %v2452
        %v2606 = vsel %vm2573, %v2454, %v2456
        %v2607 = vsel %vm2573, %v2456, %v2458
        %v2608 = vsel %vm2573, %v2460, %v2462
        %v2609 = vsel %vm2573, %v2462, %v2464
        %v2610 = vsel %vm2573, %v2466, %v2468
        %v2611 = vsel %vm2573, %v2468, %v2470
        %v2612 = vsel %vm2573, %v2472, %v2474
        %v2613 = vsel %vm2573, %v2474, %v2476
        %v2614 = vsel %vm2573, %v2478, %v2480
        %v2615 = vsel %vm2573, %v2480, %v2482
        %v2616 = vsel %vm2573, %v2484, %v2486
        %v2617 = vsel %vm2573, %v2486, %v2488
        %v2618 = vsel %vm2573, %v2490, %v2492
        %v2619 = vsel %vm2573, %v2492, %v2494
        %v2620 = vsel %vm2573, %v2496, %v2498
        %v2621 = vsel %vm2573, %v2498, %v2500
        %v2622 = vsel %vm2573, %v2502, %v2504
        %v2623 = vsel %vm2573, %v2504, %v2506
        %v2624 = vsel %vm2573, %v2508, %v2510
        %v2625 = vsel %vm2573, %v2510, %v2512
        %v2626 = vsel %vm2573, %v2514, %v2516
        %v2627 = vsel %vm2573, %v2516, %v2518
        %v2628 = vsel %vm2573, %v2520, %v2522
        %v2629 = vsel %vm2573, %v2522, %v2524
        %v2630 = vsel %vm2573, %v2526, %v2528
        %v2631 = vsel %vm2573, %v2528, %v2530
        %v2632 = vsel %vm2573, %v2532, %v2534
        %v2633 = vsel %vm2573, %v2534, %v2536
        %v2634 = vsel %vm2573, %v2538, %v2540
        %v2635 = vsel %vm2573, %v2540, %v2542
        %v2636 = vsel %vm2573, %v2544, %v2546
        %v2637 = vsel %vm2573, %v2546, %v2548
        %v2638 = vsel %vm2573, %v2550, %v2552
        %v2639 = vsel %vm2573, %v2552, %v2554
        %v2640 = vsel %vm2573, %v2556, %v2558
        %v2641 = vsel %vm2573, %v2558, %v2560
        %v2642 = vsel %vm2573, %v2562, %v2564
        %v2643 = vsel %vm2573, %v2564, %v2566
        %v2644 = vsel %vm2573, %v2568, %v2570
        %v2645 = vsel %vm2573, %v2570, %v2572
        %v2718 = vadd.f32 %v1563, %v2574
        %v2719 = vadd.f32 %v1564, %v2575
        %v2720 = vadd.f32 %v1566, %v2576
        %v2721 = vadd.f32 %v1567, %v2577
        %v2722 = vadd.f32 %v1569, %v2578
        %v2723 = vadd.f32 %v1570, %v2579
        %v2724 = vadd.f32 %v1572, %v2580
        %v2725 = vadd.f32 %v1573, %v2581
        %v2726 = vadd.f32 %v1575, %v2582
        %v2727 = vadd.f32 %v1576, %v2583
        %v2728 = vadd.f32 %v1578, %v2584
        %v2729 = vadd.f32 %v1579, %v2585
        %v2730 = vadd.f32 %v1581, %v2586
        %v2731 = vadd.f32 %v1582, %v2587
        %v2732 = vadd.f32 %v1584, %v2588
        %v2733 = vadd.f32 %v1585, %v2589
        %v2734 = vadd.f32 %v1587, %v2590
        %v2735 = vadd.f32 %v1588, %v2591
        %v2736 = vadd.f32 %v1590, %v2592
        %v2737 = vadd.f32 %v1591, %v2593
        %v2738 = vadd.f32 %v1593, %v2594
        %v2739 = vadd.f32 %v1594, %v2595
        %v2740 = vadd.f32 %v1596, %v2596
        %v2741 = vadd.f32 %v1597, %v2597
        %v2742 = vadd.f32 %v1599, %v2598
        %v2743 = vadd.f32 %v1600, %v2599
        %v2744 = vadd.f32 %v1602, %v2600
        %v2745 = vadd.f32 %v1603, %v2601
        %v2746 = vadd.f32 %v1605, %v2602
        %v2747 = vadd.f32 %v1606, %v2603
        %v2748 = vadd.f32 %v1608, %v2604
        %v2749 = vadd.f32 %v1609, %v2605
        %v2750 = vadd.f32 %v1611, %v2606
        %v2751 = vadd.f32 %v1612, %v2607
        %v2752 = vadd.f32 %v1614, %v2608
        %v2753 = vadd.f32 %v1615, %v2609
        %v2754 = vadd.f32 %v1617, %v2610
        %v2755 = vadd.f32 %v1618, %v2611
        %v2756 = vadd.f32 %v1620, %v2612
        %v2757 = vadd.f32 %v1621, %v2613
        %v2758 = vadd.f32 %v1623, %v2614
        %v2759 = vadd.f32 %v1624, %v2615
        %v2760 = vadd.f32 %v1626, %v2616
        %v2761 = vadd.f32 %v1627, %v2617
        %v2762 = vadd.f32 %v1629, %v2618
        %v2763 = vadd.f32 %v1630, %v2619
        %v2764 = vadd.f32 %v1632, %v2620
        %v2765 = vadd.f32 %v1633, %v2621
        %v2766 = vadd.f32 %v1635, %v2622
        %v2767 = vadd.f32 %v1636, %v2623
        %v2768 = vadd.f32 %v1638, %v2624
        %v2769 = vadd.f32 %v1639, %v2625
        %v2770 = vadd.f32 %v1641, %v2626
        %v2771 = vadd.f32 %v1642, %v2627
        %v2772 = vadd.f32 %v1644, %v2628
        %v2773 = vadd.f32 %v1645, %v2629
        %v2774 = vadd.f32 %v1647, %v2630
        %v2775 = vadd.f32 %v1648, %v2631
        %v2776 = vadd.f32 %v1650, %v2632
        %v2777 = vadd.f32 %v1651, %v2633
        %v2778 = vadd.f32 %v1653, %v2634
        %v2779 = vadd.f32 %v1654, %v2635
        %v2780 = vadd.f32 %v1656, %v2636
        %v2781 = vadd.f32 %v1657, %v2637
        %v2782 = vadd.f32 %v1659, %v2638
        %v2783 = vadd.f32 %v1660, %v2639
        %v2784 = vadd.f32 %v1662, %v2640
        %v2785 = vadd.f32 %v1663, %v2641
        %v2786 = vadd.f32 %v1665, %v2642
        %v2787 = vadd.f32 %v1666, %v2643
        %v2788 = vadd.f32 %v1668, %v2644
        %v2789 = vadd.f32 %v1669, %v2645
        %vm2790 = vcmp.ge.f32.partialorder %v2754, 0.999
        %vm2791 = vcmp.ge.f32.partialorder %v2755, 0.999
        %vm2792 = vcmp.ge.f32.partialorder %v2756, 0.999
        %vm2793 = vcmp.ge.f32.partialorder %v2757, 0.999
        %vm2794 = vcmp.ge.f32.partialorder %v2758, 0.999
        %vm2795 = vcmp.ge.f32.partialorder %v2759, 0.999
        %vm2796 = vcmp.ge.f32.partialorder %v2760, 0.999
        %vm2797 = vcmp.ge.f32.partialorder %v2761, 0.999
        %vm2798 = vcmp.ge.f32.partialorder %v2762, 0.999
        %vm2799 = vcmp.ge.f32.partialorder %v2763, 0.999
        %vm2800 = vcmp.ge.f32.partialorder %v2764, 0.999
        %vm2801 = vcmp.ge.f32.partialorder %v2765, 0.999
        %vm2802 = vcmp.ge.f32.partialorder %v2766, 0.999
        %vm2803 = vcmp.ge.f32.partialorder %v2767, 0.999
        %vm2804 = vcmp.ge.f32.partialorder %v2768, 0.999
        %vm2805 = vcmp.ge.f32.partialorder %v2769, 0.999
        %vm2806 = vcmp.ge.f32.partialorder %v2770, 0.999
        %vm2807 = vcmp.ge.f32.partialorder %v2771, 0.999
        %vm2808 = vcmp.ge.f32.partialorder %v2772, 0.999
        %vm2809 = vcmp.ge.f32.partialorder %v2773, 0.999
        %vm2810 = vcmp.ge.f32.partialorder %v2774, 0.999
        %vm2811 = vcmp.ge.f32.partialorder %v2775, 0.999
        %vm2812 = vcmp.ge.f32.partialorder %v2776, 0.999
        %vm2813 = vcmp.ge.f32.partialorder %v2777, 0.999
        %vm2814 = vcmp.ge.f32.partialorder %v2778, 0.999
        %vm2815 = vcmp.ge.f32.partialorder %v2779, 0.999
        %vm2816 = vcmp.ge.f32.partialorder %v2780, 0.999
        %vm2817 = vcmp.ge.f32.partialorder %v2781, 0.999
        %vm2818 = vcmp.ge.f32.partialorder %v2782, 0.999
        %vm2819 = vcmp.ge.f32.partialorder %v2783, 0.999
        %vm2820 = vcmp.ge.f32.partialorder %v2784, 0.999
        %vm2821 = vcmp.ge.f32.partialorder %v2785, 0.999
        %vm2822 = vcmp.ge.f32.partialorder %v2786, 0.999
        %vm2823 = vcmp.ge.f32.partialorder %v2787, 0.999
        %vm2824 = vcmp.ge.f32.partialorder %v2788, 0.999
        %vm2825 = vcmp.ge.f32.partialorder %v2789, 0.999
        %v2826 = vsel %vm2790, %v2754, 0.0
        %v2827 = vsel %vm2791, %v2755, 0.0
        %v2828 = vsel %vm2792, %v2756, 0.0
        %v2829 = vsel %vm2793, %v2757, 0.0
        %v2830 = vsel %vm2794, %v2758, 0.0
        %v2831 = vsel %vm2795, %v2759, 0.0
        %v2832 = vsel %vm2796, %v2760, 0.0
        %v2833 = vsel %vm2797, %v2761, 0.0
        %v2834 = vsel %vm2798, %v2762, 0.0
        %v2835 = vsel %vm2799, %v2763, 0.0
        %v2836 = vsel %vm2800, %v2764, 0.0
        %v2837 = vsel %vm2801, %v2765, 0.0
        %v2838 = vsel %vm2802, %v2766, 0.0
        %v2839 = vsel %vm2803, %v2767, 0.0
        %v2840 = vsel %vm2804, %v2768, 0.0
        %v2841 = vsel %vm2805, %v2769, 0.0
        %v2842 = vsel %vm2806, %v2770, 0.0
        %v2843 = vsel %vm2807, %v2771, 0.0
        %v2844 = vsel %vm2808, %v2772, 0.0
        %v2845 = vsel %vm2809, %v2773, 0.0
        %v2846 = vsel %vm2810, %v2774, 0.0
        %v2847 = vsel %vm2811, %v2775, 0.0
        %v2848 = vsel %vm2812, %v2776, 0.0
        %v2849 = vsel %vm2813, %v2777, 0.0
        %v2850 = vsel %vm2814, %v2778, 0.0
        %v2851 = vsel %vm2815, %v2779, 0.0
        %v2852 = vsel %vm2816, %v2780, 0.0
        %v2853 = vsel %vm2817, %v2781, 0.0
        %v2854 = vsel %vm2818, %v2782, 0.0
        %v2855 = vsel %vm2819, %v2783, 0.0
        %v2856 = vsel %vm2820, %v2784, 0.0
        %v2857 = vsel %vm2821, %v2785, 0.0
        %v2858 = vsel %vm2822, %v2786, 0.0
        %v2859 = vsel %vm2823, %v2787, 0.0
        %v2860 = vsel %vm2824, %v2788, 0.0
        %v2861 = vsel %vm2825, %v2789, 0.0
        %v2862 = vmul.f32 %v2718, %v2826
        %v2863 = vmul.f32 %v2719, %v2827
        %v2864 = vmul.f32 %v2720, %v2828
        %v2865 = vmul.f32 %v2721, %v2829
        %v2866 = vmul.f32 %v2722, %v2830
        %v2867 = vmul.f32 %v2723, %v2831
        %v2868 = vmul.f32 %v2724, %v2832
        %v2869 = vmul.f32 %v2725, %v2833
        %v2870 = vmul.f32 %v2726, %v2834
        %v2871 = vmul.f32 %v2727, %v2835
        %v2872 = vmul.f32 %v2728, %v2836
        %v2873 = vmul.f32 %v2729, %v2837
        %v2874 = vmul.f32 %v2730, %v2838
        %v2875 = vmul.f32 %v2731, %v2839
        %v2876 = vmul.f32 %v2732, %v2840
        %v2877 = vmul.f32 %v2733, %v2841
        %v2878 = vmul.f32 %v2734, %v2842
        %v2879 = vmul.f32 %v2735, %v2843
        %v2880 = vmul.f32 %v2736, %v2844
        %v2881 = vmul.f32 %v2737, %v2845
        %v2882 = vmul.f32 %v2738, %v2846
        %v2883 = vmul.f32 %v2739, %v2847
        %v2884 = vmul.f32 %v2740, %v2848
        %v2885 = vmul.f32 %v2741, %v2849
        %v2886 = vmul.f32 %v2742, %v2850
        %v2887 = vmul.f32 %v2743, %v2851
        %v2888 = vmul.f32 %v2744, %v2852
        %v2889 = vmul.f32 %v2745, %v2853
        %v2890 = vmul.f32 %v2746, %v2854
        %v2891 = vmul.f32 %v2747, %v2855
        %v2892 = vmul.f32 %v2748, %v2856
        %v2893 = vmul.f32 %v2749, %v2857
        %v2894 = vmul.f32 %v2750, %v2858
        %v2895 = vmul.f32 %v2751, %v2859
        %v2896 = vmul.f32 %v2752, %v2860
        %v2897 = vmul.f32 %v2753, %v2861
        // Predicated region
        $region37: #{tpu_custom_call.1} parent=23 // pred_check
          %p2898 = pneg %p157
        $region38: #{tpu_custom_call.1} parent=23 // pred_check_branch
          %2900 = sbr.rel (%p2898) target = $region40
        $region39: #{tpu_custom_call.1} parent=23 // pred_region
          %s2901 = smul.u32 8, 3
          %s2902 = smul.u32 %s2901, 38
          %s2903 = smul.u32 %s2902, 3
          %s2904 = sshll.u32 %s2903, 4
          %2905 = dma.done [#allocation2], %s2904
        $region40: #{tpu_custom_call.1} parent=23 // pred_fallthru
          _
        %s2906 = sshra.s32 %s156, 7
        %s2907 = sand.u32 %s156, 127
        %s2908 = sshra.s32 %s155, 3
        %s2909 = sand.u32 %s155, 7
        %s2910 = smul.u32 %s2908, 3
        %s2911 = sadd.s32 %s2906, %s2910
        %s2912 = smul.addr %s2911, 8
        %s2913 = scalar_lea.vmem [#allocation11], %s2912
        %v2914 = vld [vmem:[%s2913] sm:$0xff]
        %v2915 = vld [vmem:[%s2913 + $0x8] sm:$0xff]
        %v2916 = vld [vmem:[%s2913 + $0x18] sm:$0xff]
        %v2917 = vld [vmem:[%s2913 + $0x20] sm:$0xff]
        %v2918 = vld [vmem:[%s2913 + $0x30] sm:$0xff]
        %v2919 = vld [vmem:[%s2913 + $0x38] sm:$0xff]
        %v2920 = vld [vmem:[%s2913 + $0x48] sm:$0xff]
        %v2921 = vld [vmem:[%s2913 + $0x50] sm:$0xff]
        %v2922 = vld [vmem:[%s2913 + $0x60] sm:$0xff]
        %v2923 = vld [vmem:[%s2913 + $0x68] sm:$0xff]
        %v2924 = vld [vmem:[%s2913 + $0x78] sm:$0xff]
        %v2925 = vld [vmem:[%s2913 + $0x80] sm:$0xff]
        %v2926 = vld [vmem:[%s2913 + $0x390] sm:$0xff]
        %v2927 = vld [vmem:[%s2913 + $0x398] sm:$0xff]
        %v2928 = vld [vmem:[%s2913 + $0x3a8] sm:$0xff]
        %v2929 = vld [vmem:[%s2913 + $0x3b0] sm:$0xff]
        %v2930 = vld [vmem:[%s2913 + $0x3c0] sm:$0xff]
        %v2931 = vld [vmem:[%s2913 + $0x3c8] sm:$0xff]
        %v2932 = vld [vmem:[%s2913 + $0x3d8] sm:$0xff]
        %v2933 = vld [vmem:[%s2913 + $0x3e0] sm:$0xff]
        %v2934 = vld [vmem:[%s2913 + $0x3f0] sm:$0xff]
        %v2935 = vld [vmem:[%s2913 + $0x3f8] sm:$0xff]
        %v2936 = vld [vmem:[%s2913 + $0x408] sm:$0xff]
        %v2937 = vld [vmem:[%s2913 + $0x410] sm:$0xff]
        %v2938 = vld [vmem:[%s2913 + $0x720] sm:$0xff]
        %v2939 = vld [vmem:[%s2913 + $0x728] sm:$0xff]
        %v2940 = vld [vmem:[%s2913 + $0x738] sm:$0xff]
        %v2941 = vld [vmem:[%s2913 + $0x740] sm:$0xff]
        %v2942 = vld [vmem:[%s2913 + $0x750] sm:$0xff]
        %v2943 = vld [vmem:[%s2913 + $0x758] sm:$0xff]
        %v2944 = vld [vmem:[%s2913 + $0x768] sm:$0xff]
        %v2945 = vld [vmem:[%s2913 + $0x770] sm:$0xff]
        %v2946 = vld [vmem:[%s2913 + $0x780] sm:$0xff]
        %v2947 = vld [vmem:[%s2913 + $0x788] sm:$0xff]
        %v2948 = vld [vmem:[%s2913 + $0x798] sm:$0xff]
        %v2949 = vld [vmem:[%s2913 + $0x7a0] sm:$0xff]
        %vm2950 = vcmp.eq.f32.partialorder %v2862, 0.0
        %vm2951 = vcmp.eq.f32.partialorder %v2863, 0.0
        %vm2952 = vcmp.eq.f32.partialorder %v2864, 0.0
        %vm2953 = vcmp.eq.f32.partialorder %v2865, 0.0
        %vm2954 = vcmp.eq.f32.partialorder %v2866, 0.0
        %vm2955 = vcmp.eq.f32.partialorder %v2867, 0.0
        %vm2956 = vcmp.eq.f32.partialorder %v2868, 0.0
        %vm2957 = vcmp.eq.f32.partialorder %v2869, 0.0
        %vm2958 = vcmp.eq.f32.partialorder %v2870, 0.0
        %vm2959 = vcmp.eq.f32.partialorder %v2871, 0.0
        %vm2960 = vcmp.eq.f32.partialorder %v2872, 0.0
        %vm2961 = vcmp.eq.f32.partialorder %v2873, 0.0
        %vm2962 = vcmp.eq.f32.partialorder %v2874, 0.0
        %vm2963 = vcmp.eq.f32.partialorder %v2875, 0.0
        %vm2964 = vcmp.eq.f32.partialorder %v2876, 0.0
        %vm2965 = vcmp.eq.f32.partialorder %v2877, 0.0
        %vm2966 = vcmp.eq.f32.partialorder %v2878, 0.0
        %vm2967 = vcmp.eq.f32.partialorder %v2879, 0.0
        %vm2968 = vcmp.eq.f32.partialorder %v2880, 0.0
        %vm2969 = vcmp.eq.f32.partialorder %v2881, 0.0
        %vm2970 = vcmp.eq.f32.partialorder %v2882, 0.0
        %vm2971 = vcmp.eq.f32.partialorder %v2883, 0.0
        %vm2972 = vcmp.eq.f32.partialorder %v2884, 0.0
        %vm2973 = vcmp.eq.f32.partialorder %v2885, 0.0
        %vm2974 = vcmp.eq.f32.partialorder %v2886, 0.0
        %vm2975 = vcmp.eq.f32.partialorder %v2887, 0.0
        %vm2976 = vcmp.eq.f32.partialorder %v2888, 0.0
        %vm2977 = vcmp.eq.f32.partialorder %v2889, 0.0
        %vm2978 = vcmp.eq.f32.partialorder %v2890, 0.0
        %vm2979 = vcmp.eq.f32.partialorder %v2891, 0.0
        %vm2980 = vcmp.eq.f32.partialorder %v2892, 0.0
        %vm2981 = vcmp.eq.f32.partialorder %v2893, 0.0
        %vm2982 = vcmp.eq.f32.partialorder %v2894, 0.0
        %vm2983 = vcmp.eq.f32.partialorder %v2895, 0.0
        %vm2984 = vcmp.eq.f32.partialorder %v2896, 0.0
        %vm2985 = vcmp.eq.f32.partialorder %v2897, 0.0
        %v2986 = vsel %vm2950, %v2914, %v2862
        %v2987 = vsel %vm2951, %v2915, %v2863
        %v2988 = vsel %vm2952, %v2916, %v2864
        %v2989 = vsel %vm2953, %v2917, %v2865
        %v2990 = vsel %vm2954, %v2918, %v2866
        %v2991 = vsel %vm2955, %v2919, %v2867
        %v2992 = vsel %vm2956, %v2920, %v2868
        %v2993 = vsel %vm2957, %v2921, %v2869
        %v2994 = vsel %vm2958, %v2922, %v2870
        %v2995 = vsel %vm2959, %v2923, %v2871
        %v2996 = vsel %vm2960, %v2924, %v2872
        %v2997 = vsel %vm2961, %v2925, %v2873
        %v2998 = vsel %vm2962, %v2926, %v2874
        %v2999 = vsel %vm2963, %v2927, %v2875
        %v3000 = vsel %vm2964, %v2928, %v2876
        %v3001 = vsel %vm2965, %v2929, %v2877
        %v3002 = vsel %vm2966, %v2930, %v2878
        %v3003 = vsel %vm2967, %v2931, %v2879
        %v3004 = vsel %vm2968, %v2932, %v2880
        %v3005 = vsel %vm2969, %v2933, %v2881
        %v3006 = vsel %vm2970, %v2934, %v2882
        %v3007 = vsel %vm2971, %v2935, %v2883
        %v3008 = vsel %vm2972, %v2936, %v2884
        %v3009 = vsel %vm2973, %v2937, %v2885
        %v3010 = vsel %vm2974, %v2938, %v2886
        %v3011 = vsel %vm2975, %v2939, %v2887
        %v3012 = vsel %vm2976, %v2940, %v2888
        %v3013 = vsel %vm2977, %v2941, %v2889
        %v3014 = vsel %vm2978, %v2942, %v2890
        %v3015 = vsel %vm2979, %v2943, %v2891
        %v3016 = vsel %vm2980, %v2944, %v2892
        %v3017 = vsel %vm2981, %v2945, %v2893
        %v3018 = vsel %vm2982, %v2946, %v2894
        %v3019 = vsel %vm2983, %v2947, %v2895
        %v3020 = vsel %vm2984, %v2948, %v2896
        %v3021 = vsel %vm2985, %v2949, %v2897
        %3022 = vst [vmem:[%s2913] sm:$0xff] %v2986
        %3023 = vst [vmem:[%s2913 + $0x8] sm:$0xff] %v2987
        %3024 = vst [vmem:[%s2913 + $0x18] sm:$0xff] %v2988
        %3025 = vst [vmem:[%s2913 + $0x20] sm:$0xff] %v2989
        %3026 = vst [vmem:[%s2913 + $0x30] sm:$0xff] %v2990
        %3027 = vst [vmem:[%s2913 + $0x38] sm:$0xff] %v2991
        %3028 = vst [vmem:[%s2913 + $0x48] sm:$0xff] %v2992
        %3029 = vst [vmem:[%s2913 + $0x50] sm:$0xff] %v2993
        %3030 = vst [vmem:[%s2913 + $0x60] sm:$0xff] %v2994
        %3031 = vst [vmem:[%s2913 + $0x68] sm:$0xff] %v2995
        %3032 = vst [vmem:[%s2913 + $0x78] sm:$0xff] %v2996
        %3033 = vst [vmem:[%s2913 + $0x80] sm:$0xff] %v2997
        %3034 = vst [vmem:[%s2913 + $0x390] sm:$0xff] %v2998
        %3035 = vst [vmem:[%s2913 + $0x398] sm:$0xff] %v2999
        %3036 = vst [vmem:[%s2913 + $0x3a8] sm:$0xff] %v3000
        %3037 = vst [vmem:[%s2913 + $0x3b0] sm:$0xff] %v3001
        %3038 = vst [vmem:[%s2913 + $0x3c0] sm:$0xff] %v3002
        %3039 = vst [vmem:[%s2913 + $0x3c8] sm:$0xff] %v3003
        %3040 = vst [vmem:[%s2913 + $0x3d8] sm:$0xff] %v3004
        %3041 = vst [vmem:[%s2913 + $0x3e0] sm:$0xff] %v3005
        %3042 = vst [vmem:[%s2913 + $0x3f0] sm:$0xff] %v3006
        %3043 = vst [vmem:[%s2913 + $0x3f8] sm:$0xff] %v3007
        %3044 = vst [vmem:[%s2913 + $0x408] sm:$0xff] %v3008
        %3045 = vst [vmem:[%s2913 + $0x410] sm:$0xff] %v3009
        %3046 = vst [vmem:[%s2913 + $0x720] sm:$0xff] %v3010
        %3047 = vst [vmem:[%s2913 + $0x728] sm:$0xff] %v3011
        %3048 = vst [vmem:[%s2913 + $0x738] sm:$0xff] %v3012
        %3049 = vst [vmem:[%s2913 + $0x740] sm:$0xff] %v3013
        %3050 = vst [vmem:[%s2913 + $0x750] sm:$0xff] %v3014
        %3051 = vst [vmem:[%s2913 + $0x758] sm:$0xff] %v3015
        %3052 = vst [vmem:[%s2913 + $0x768] sm:$0xff] %v3016
        %3053 = vst [vmem:[%s2913 + $0x770] sm:$0xff] %v3017
        %3054 = vst [vmem:[%s2913 + $0x780] sm:$0xff] %v3018
        %3055 = vst [vmem:[%s2913 + $0x788] sm:$0xff] %v3019
        %3056 = vst [vmem:[%s2913 + $0x798] sm:$0xff] %v3020
        %3057 = vst [vmem:[%s2913 + $0x7a0] sm:$0xff] %v3021
        // Predicated region
        $region41: #{tpu_custom_call.1} parent=23 // pred_check
          %p3058 = pneg %p83
        $region42: #{tpu_custom_call.1} parent=23 // pred_check_branch
          %3060 = sbr.rel (%p3058) target = $region44
        $region43: #{tpu_custom_call.1} parent=23 // pred_region
          %3062 = vsyncadd [#allocation10], 0
          %s3063 = sshll.u32 [#allocation11], 4
          %s3064 = int_to_ptr.vmem [resolvable:$true] %s3063
          %s3065 = sshll.u32 %s6, 4
          %s3066 = int_to_ptr.hbm [resolvable:$true] %s3065
          %3071 = dma.vmem_to_hbm [thread:$0]  %s3064, 43776, %s3066, [#allocation10], 384, 384, 24
        $region44: #{tpu_custom_call.1} parent=23 // pred_fallthru
          _
        // Predicated region
        $region45: #{tpu_custom_call.1} parent=23 // pred_check
          %p3072 = pneg %p83
        $region46: #{tpu_custom_call.1} parent=23 // pred_check_branch
          %3074 = sbr.rel (%p3072) target = $region48
        $region47: #{tpu_custom_call.1} parent=23 // pred_region
          %3076 = dma.done [#allocation10], 43776
        $region48: #{tpu_custom_call.1} parent=23 // pred_fallthru
          _
      $region24: #{tpu_custom_call.1} parent=5 // pred_fallthru
        _
      %p3077 = scmp.le.s32.totalorder 2, %s39
      // Predicated region
      $region49: #{tpu_custom_call.1} parent=5 // pred_check
        %p3078 = pneg %p3077
      $region50: #{tpu_custom_call.1} parent=5 // pred_check_branch
        %3080 = sbr.rel (%p3078) target = $region52
      $region51: #{tpu_custom_call.1} parent=5 // pred_region
        %s3081 = ssub.s32 %s39, 2
      $region52: #{tpu_custom_call.1} parent=5 // pred_fallthru
        _
    $region6: #{tpu_custom_call.1} parent=1 // loop_footer
      %s43 = sadd.s32 1, %s39
    $region7: #{tpu_custom_call.1} parent=1 // loop_footer_branch
      %38 = sbr.rel target = $region3
    $region8: #{tpu_custom_call.1} parent=1 // loop_exit
      _
    %3082 = vsyncpa [#allocation9], 1
    %s3083 = scalar_lea.sflag [#allocation9], 1
    %3084 = vsyncpa %s3083, 1
    %3085 = vsyncpa [#allocation10], 1
    %s3086 = scalar_lea.sflag [#allocation10], 1
    %3087 = vsyncpa %s3086, 1
  %3088 = vsyncmov [#allocation2]
  %s3089 = vpop.sfrf %3088
  %p3090 = scmp.eq.s32.totalorder %s3089, 0
  %p3091 = pneg %p3090
  %3093 = shalt.err (%p3091)

</llo_original>
